<compile_context>
chip_gen: v7x
topology: tpu7x:2x2x1
jax: 0.10.0
libtpu: 0.0.40
codegen_flags: <defaults>
</compile_context>

<pallas_src>
import functools

import jax
import jax.numpy as jnp
from jax.experimental import pallas as pl
from jax.experimental.pallas import tpu as pltpu


def _round_up(v, m):
    return (v + m - 1) // m * m


def _down_conv_kernel(x_ref, w_ref, b_ref, o_ref, *, precision):
    """One grid step == one tile of Pt output pixels (rows of the patch matrix).

    x_ref: [9, Pt, C]     per-tap stride-2 input patches (compute dtype)
    w_ref: [9, C, C_pad]  per-tap weight matrices (compute dtype)
    b_ref: [1, C_pad]     bias (f32)
    o_ref: [Pt, C_pad]    output tile (lane-dense, C_pad % 128 == 0)
    """
    # 9 accumulated per-tap matmuls, f32 accumulate.  No scratch, no zeroing,
    # no copy prologue -- the MXU starts on the first bundle.
    acc = jnp.dot(x_ref[0], w_ref[0],
                  preferred_element_type=jnp.float32, precision=precision)
    for t in range(1, 9):
        acc = acc + jnp.dot(x_ref[t], w_ref[t],
                            preferred_element_type=jnp.float32,
                            precision=precision)
    # Bias epilogue in f32 (v5e has no bf16 VPU path), then cast + store.
    o_ref[...] = (acc + b_ref[...]).astype(o_ref.dtype)


def downsample_conv(x, weight, bias, *, use_bf16=True, precision=None):
    """Equivalent of nn.Conv2d(C, C, kernel_size=3, stride=2, padding=1)(x).

    x:      [N, C, H, W]   (NCHW, like PyTorch)
    weight: [C, C, 3, 3]   (OIHW, like PyTorch)
    bias:   [C]
    returns [N, C, Ho, Wo]
    """
    N, C, H, W = x.shape
    assert weight.shape == (C, C, 3, 3) and bias.shape == (C,)
    Ho = (H + 1) // 2
    Wo = (W + 1) // 2
    P = Ho * Wo
    NP = N * P

    compute_dtype = jnp.bfloat16 if use_bf16 else jnp.float32
    csize = jnp.dtype(compute_dtype).itemsize
    C_pad = _round_up(C, 128)          # lane-dense output stores

    # --- wrapper-side layout (pure XLA data movement) ------------------------
    # NCHW -> NHWC, pad spatial by 1, extract the 9 stride-2 tap windows and
    # flatten each to a [N*Ho*Wo, C] matrix (tap-major stack).
    xt = jnp.transpose(x, (0, 2, 3, 1)).astype(compute_dtype)    # [N, H, W, C]
    xp = jnp.pad(xt, ((0, 0), (1, 1), (1, 1), (0, 0)))           # [N, H+2, W+2, C]
    taps = []
    for ky in range(3):
        for kx in range(3):
            win = xp[:, ky:ky + 2 * Ho - 1:2, kx:kx + 2 * Wo - 1:2, :]  # [N,Ho,Wo,C]
            taps.append(win.reshape(NP, C))
    taps = jnp.stack(taps, axis=0)                               # [9, NP, C]

    # Row-tile size: big enough to fill the MXU M dim and amortize the
    # ~0.35us/step overhead, small enough to bound per-step VMEM (activation
    # block <= ~2 MiB per buffer) and give both v7x TensorCores work.
    row_bytes = 9 * C * csize
    pt_cap = ((2 << 20) // row_bytes) // 128 * 128
    pt_cap = max(128, min(1024, pt_cap))
    Pt = min(pt_cap, _round_up(NP, 16))
    NP_pad = _round_up(NP, Pt)
    if NP_pad != NP:
        taps = jnp.pad(taps, ((0, 0), (0, NP_pad - NP), (0, 0)))

    # PyTorch OIHW weight -> per-tap [ci, co]; pad ONLY the output channels.
    w_taps = jnp.transpose(weight, (2, 3, 1, 0)).reshape(9, C, C)    # [tap, ci, co]
    w_mat = jnp.zeros((9, C, C_pad), compute_dtype)
    w_mat = w_mat.at[:, :, :C].set(w_taps.astype(compute_dtype))
    b_row = jnp.zeros((1, C_pad), jnp.float32).at[0, :C].set(bias.astype(jnp.float32))

    kernel = functools.partial(_down_conv_kernel, precision=precision)

    cost = pl.CostEstimate(
        flops=2 * NP * 9 * C * C_pad,
        transcendentals=0,
        bytes_accessed=int(taps.size * csize + w_mat.size * csize
                           + b_row.size * 4
                           + NP_pad * C_pad * jnp.dtype(x.dtype).itemsize),
    )

    out = pl.pallas_call(
        kernel,
        out_shape=jax.ShapeDtypeStruct((NP_pad, C_pad), x.dtype),
        grid_spec=pltpu.PrefetchScalarGridSpec(
            num_scalar_prefetch=0,
            grid=(NP_pad // Pt,),      # flattened N x row-tiles; auto double-buffered
            in_specs=[
                pl.BlockSpec((9, Pt, C), lambda i: (0, i, 0)),
                # Grid-invariant weight/bias (constant index_map).  For very
                # large C, single-buffer these (pipeline_mode=pl.Buffered(1))
                # to reclaim the duplicated VMEM buffer.
                pl.BlockSpec((9, C, C_pad), lambda i: (0, 0, 0)),
                pl.BlockSpec((1, C_pad), lambda i: (0, 0)),
            ],
            out_specs=pl.BlockSpec((Pt, C_pad), lambda i: (i, 0)),
        ),
        compiler_params=pltpu.CompilerParams(
            dimension_semantics=("parallel",)),   # megacore split on v7x
        cost_estimate=cost,
    )(taps, w_mat, b_row)

    # Strip row / channel padding; (N*Ho*Wo, C) -> NCHW.
    out = out[:NP, :C].reshape(N, Ho, Wo, C)
    return jnp.transpose(out, (0, 3, 1, 2)).astype(x.dtype)


if __name__ == "__main__":
    key = jax.random.PRNGKey(0)
    kx_, kw_, kb_ = jax.random.split(key, 3)

    N, C, H, W = 2, 4, 16, 16
    x = jax.random.normal(kx_, (N, C, H, W), dtype=jnp.float32)

    # Deterministic synthetic parameters (shapes from nn.Conv2d(C, C, 3, 2, 1)).
    fan_in = C * 3 * 3
    weight = jax.random.normal(kw_, (C, C, 3, 3), dtype=jnp.float32) / jnp.sqrt(fan_in)
    bias = jax.random.normal(kb_, (C,), dtype=jnp.float32) * 0.1

    # Reference (same semantics as PyTorch Conv2d), computed at full precision.
    y_ref = jax.lax.conv_general_dilated(
        x, weight,
        window_strides=(2, 2),
        padding=((1, 1), (1, 1)),
        dimension_numbers=("NCHW", "OIHW", "NCHW"),
        precision=jax.lax.Precision.HIGHEST,
    ) + bias.reshape(1, C, 1, 1)

    # Default path: bf16 MXU feed, f32 accumulate + f32 bias epilogue.
    y = jax.block_until_ready(downsample_conv(x, weight, bias))
    assert y.shape == (N, C, H // 2, W // 2), y.shape
    assert jnp.allclose(y, y_ref, rtol=5e-2, atol=5e-2), \
        float(jnp.max(jnp.abs(y - y_ref)))

    # f32-feed path.  Tolerance is loose because the default MXU precision for
    # f32 operands may be a reduced-precision pass; pass
    # precision=jax.lax.Precision.HIGHEST for bit-tight f32 results.
    y32 = jax.block_until_ready(downsample_conv(x, weight, bias, use_bf16=False))
    assert jnp.allclose(y32, y_ref, rtol=2e-2, atol=2e-2), \
        float(jnp.max(jnp.abs(y32 - y_ref)))

    print("KERNEL_OK")
</pallas_src>

<mosaic_0001>
module attributes {stable_mosaic.version = 11 : i64} {
  func.func @_down_conv_kernel(%arg0: i32, %arg1: memref<9x128x4xbf16, #tpu.memory_space<vmem>>, %arg2: memref<9x4x128xbf16, #tpu.memory_space<vmem>>, %arg3: memref<1x128xf32, #tpu.memory_space<vmem>>, %arg4: memref<128x128xf32, #tpu.memory_space<vmem>>) attributes {dimension_semantics = [#tpu.dimension_semantics<parallel>], iteration_bounds = array<i64: 1>, scalar_prefetch = 0 : i64, scratch_operands = 0 : i64, tpu.core_type = #tpu.core_type<tc>, window_params = [{transform_indices = @transform_0, window_bounds = array<i64: 9, 128, 4>}, {pipeline_mode = #tpu.pipeline_mode<synchronous>, transform_indices = @transform_1, window_bounds = array<i64: 9, 4, 128>}, {pipeline_mode = #tpu.pipeline_mode<synchronous>, transform_indices = @transform_2, window_bounds = array<i64: 1, 128>}, {transform_indices = @transform_3, window_bounds = array<i64: 128, 128>}]} {
    %c0 = arith.constant 0 : index
    %c0_0 = arith.constant 0 : index
    %c0_1 = arith.constant 0 : index
    %0 = vector.load %arg1[%c0, %c0_0, %c0_1] : memref<9x128x4xbf16, #tpu.memory_space<vmem>>, vector<1x128x4xbf16>
    %1 = vector.shape_cast %0 : vector<1x128x4xbf16> to vector<128x4xbf16>
    %c0_2 = arith.constant 0 : index
    %c0_3 = arith.constant 0 : index
    %c0_4 = arith.constant 0 : index
    %2 = vector.load %arg2[%c0_2, %c0_3, %c0_4] : memref<9x4x128xbf16, #tpu.memory_space<vmem>>, vector<1x4x128xbf16>
    %3 = vector.shape_cast %2 : vector<1x4x128xbf16> to vector<4x128xbf16>
    %cst = arith.constant dense<0.000000e+00> : vector<128x128xf32>
    %4 = tpu.matmul %1, %3, %cst {dimension_numbers = #tpu.dot_dimension_numbers<[1], [0], [0], [1], [0, 0, 1, 1], [], []>} : vector<128x4xbf16>, vector<4x128xbf16>, vector<128x128xf32> -> vector<128x128xf32>
    %c1 = arith.constant 1 : index
    %c0_5 = arith.constant 0 : index
    %c0_6 = arith.constant 0 : index
    %5 = vector.load %arg1[%c1, %c0_5, %c0_6] : memref<9x128x4xbf16, #tpu.memory_space<vmem>>, vector<1x128x4xbf16>
    %6 = vector.shape_cast %5 : vector<1x128x4xbf16> to vector<128x4xbf16>
    %c1_7 = arith.constant 1 : index
    %c0_8 = arith.constant 0 : index
    %c0_9 = arith.constant 0 : index
    %7 = vector.load %arg2[%c1_7, %c0_8, %c0_9] : memref<9x4x128xbf16, #tpu.memory_space<vmem>>, vector<1x4x128xbf16>
    %8 = vector.shape_cast %7 : vector<1x4x128xbf16> to vector<4x128xbf16>
    %cst_10 = arith.constant dense<0.000000e+00> : vector<128x128xf32>
    %9 = tpu.matmul %6, %8, %cst_10 {dimension_numbers = #tpu.dot_dimension_numbers<[1], [0], [0], [1], [0, 0, 1, 1], [], []>} : vector<128x4xbf16>, vector<4x128xbf16>, vector<128x128xf32> -> vector<128x128xf32>
    %10 = arith.addf %4, %9 : vector<128x128xf32>
    %c2 = arith.constant 2 : index
    %c0_11 = arith.constant 0 : index
    %c0_12 = arith.constant 0 : index
    %11 = vector.load %arg1[%c2, %c0_11, %c0_12] : memref<9x128x4xbf16, #tpu.memory_space<vmem>>, vector<1x128x4xbf16>
    %12 = vector.shape_cast %11 : vector<1x128x4xbf16> to vector<128x4xbf16>
    %c2_13 = arith.constant 2 : index
    %c0_14 = arith.constant 0 : index
    %c0_15 = arith.constant 0 : index
    %13 = vector.load %arg2[%c2_13, %c0_14, %c0_15] : memref<9x4x128xbf16, #tpu.memory_space<vmem>>, vector<1x4x128xbf16>
    %14 = vector.shape_cast %13 : vector<1x4x128xbf16> to vector<4x128xbf16>
    %cst_16 = arith.constant dense<0.000000e+00> : vector<128x128xf32>
    %15 = tpu.matmul %12, %14, %cst_16 {dimension_numbers = #tpu.dot_dimension_numbers<[1], [0], [0], [1], [0, 0, 1, 1], [], []>} : vector<128x4xbf16>, vector<4x128xbf16>, vector<128x128xf32> -> vector<128x128xf32>
    %16 = arith.addf %10, %15 : vector<128x128xf32>
    %c3 = arith.constant 3 : index
    %c0_17 = arith.constant 0 : index
    %c0_18 = arith.constant 0 : index
    %17 = vector.load %arg1[%c3, %c0_17, %c0_18] : memref<9x128x4xbf16, #tpu.memory_space<vmem>>, vector<1x128x4xbf16>
    %18 = vector.shape_cast %17 : vector<1x128x4xbf16> to vector<128x4xbf16>
    %c3_19 = arith.constant 3 : index
    %c0_20 = arith.constant 0 : index
    %c0_21 = arith.constant 0 : index
    %19 = vector.load %arg2[%c3_19, %c0_20, %c0_21] : memref<9x4x128xbf16, #tpu.memory_space<vmem>>, vector<1x4x128xbf16>
    %20 = vector.shape_cast %19 : vector<1x4x128xbf16> to vector<4x128xbf16>
    %cst_22 = arith.constant dense<0.000000e+00> : vector<128x128xf32>
    %21 = tpu.matmul %18, %20, %cst_22 {dimension_numbers = #tpu.dot_dimension_numbers<[1], [0], [0], [1], [0, 0, 1, 1], [], []>} : vector<128x4xbf16>, vector<4x128xbf16>, vector<128x128xf32> -> vector<128x128xf32>
    %22 = arith.addf %16, %21 : vector<128x128xf32>
    %c4 = arith.constant 4 : index
    %c0_23 = arith.constant 0 : index
    %c0_24 = arith.constant 0 : index
    %23 = vector.load %arg1[%c4, %c0_23, %c0_24] : memref<9x128x4xbf16, #tpu.memory_space<vmem>>, vector<1x128x4xbf16>
    %24 = vector.shape_cast %23 : vector<1x128x4xbf16> to vector<128x4xbf16>
    %c4_25 = arith.constant 4 : index
    %c0_26 = arith.constant 0 : index
    %c0_27 = arith.constant 0 : index
    %25 = vector.load %arg2[%c4_25, %c0_26, %c0_27] : memref<9x4x128xbf16, #tpu.memory_space<vmem>>, vector<1x4x128xbf16>
    %26 = vector.shape_cast %25 : vector<1x4x128xbf16> to vector<4x128xbf16>
    %cst_28 = arith.constant dense<0.000000e+00> : vector<128x128xf32>
    %27 = tpu.matmul %24, %26, %cst_28 {dimension_numbers = #tpu.dot_dimension_numbers<[1], [0], [0], [1], [0, 0, 1, 1], [], []>} : vector<128x4xbf16>, vector<4x128xbf16>, vector<128x128xf32> -> vector<128x128xf32>
    %28 = arith.addf %22, %27 : vector<128x128xf32>
    %c5 = arith.constant 5 : index
    %c0_29 = arith.constant 0 : index
    %c0_30 = arith.constant 0 : index
    %29 = vector.load %arg1[%c5, %c0_29, %c0_30] : memref<9x128x4xbf16, #tpu.memory_space<vmem>>, vector<1x128x4xbf16>
    %30 = vector.shape_cast %29 : vector<1x128x4xbf16> to vector<128x4xbf16>
    %c5_31 = arith.constant 5 : index
    %c0_32 = arith.constant 0 : index
    %c0_33 = arith.constant 0 : index
    %31 = vector.load %arg2[%c5_31, %c0_32, %c0_33] : memref<9x4x128xbf16, #tpu.memory_space<vmem>>, vector<1x4x128xbf16>
    %32 = vector.shape_cast %31 : vector<1x4x128xbf16> to vector<4x128xbf16>
    %cst_34 = arith.constant dense<0.000000e+00> : vector<128x128xf32>
    %33 = tpu.matmul %30, %32, %cst_34 {dimension_numbers = #tpu.dot_dimension_numbers<[1], [0], [0], [1], [0, 0, 1, 1], [], []>} : vector<128x4xbf16>, vector<4x128xbf16>, vector<128x128xf32> -> vector<128x128xf32>
    %34 = arith.addf %28, %33 : vector<128x128xf32>
    %c6 = arith.constant 6 : index
    %c0_35 = arith.constant 0 : index
    %c0_36 = arith.constant 0 : index
    %35 = vector.load %arg1[%c6, %c0_35, %c0_36] : memref<9x128x4xbf16, #tpu.memory_space<vmem>>, vector<1x128x4xbf16>
    %36 = vector.shape_cast %35 : vector<1x128x4xbf16> to vector<128x4xbf16>
    %c6_37 = arith.constant 6 : index
    %c0_38 = arith.constant 0 : index
    %c0_39 = arith.constant 0 : index
    %37 = vector.load %arg2[%c6_37, %c0_38, %c0_39] : memref<9x4x128xbf16, #tpu.memory_space<vmem>>, vector<1x4x128xbf16>
    %38 = vector.shape_cast %37 : vector<1x4x128xbf16> to vector<4x128xbf16>
    %cst_40 = arith.constant dense<0.000000e+00> : vector<128x128xf32>
    %39 = tpu.matmul %36, %38, %cst_40 {dimension_numbers = #tpu.dot_dimension_numbers<[1], [0], [0], [1], [0, 0, 1, 1], [], []>} : vector<128x4xbf16>, vector<4x128xbf16>, vector<128x128xf32> -> vector<128x128xf32>
    %40 = arith.addf %34, %39 : vector<128x128xf32>
    %c7 = arith.constant 7 : index
    %c0_41 = arith.constant 0 : index
    %c0_42 = arith.constant 0 : index
    %41 = vector.load %arg1[%c7, %c0_41, %c0_42] : memref<9x128x4xbf16, #tpu.memory_space<vmem>>, vector<1x128x4xbf16>
    %42 = vector.shape_cast %41 : vector<1x128x4xbf16> to vector<128x4xbf16>
    %c7_43 = arith.constant 7 : index
    %c0_44 = arith.constant 0 : index
    %c0_45 = arith.constant 0 : index
    %43 = vector.load %arg2[%c7_43, %c0_44, %c0_45] : memref<9x4x128xbf16, #tpu.memory_space<vmem>>, vector<1x4x128xbf16>
    %44 = vector.shape_cast %43 : vector<1x4x128xbf16> to vector<4x128xbf16>
    %cst_46 = arith.constant dense<0.000000e+00> : vector<128x128xf32>
    %45 = tpu.matmul %42, %44, %cst_46 {dimension_numbers = #tpu.dot_dimension_numbers<[1], [0], [0], [1], [0, 0, 1, 1], [], []>} : vector<128x4xbf16>, vector<4x128xbf16>, vector<128x128xf32> -> vector<128x128xf32>
    %46 = arith.addf %40, %45 : vector<128x128xf32>
    %c8 = arith.constant 8 : index
    %c0_47 = arith.constant 0 : index
    %c0_48 = arith.constant 0 : index
    %47 = vector.load %arg1[%c8, %c0_47, %c0_48] : memref<9x128x4xbf16, #tpu.memory_space<vmem>>, vector<1x128x4xbf16>
    %48 = vector.shape_cast %47 : vector<1x128x4xbf16> to vector<128x4xbf16>
    %c8_49 = arith.constant 8 : index
    %c0_50 = arith.constant 0 : index
    %c0_51 = arith.constant 0 : index
    %49 = vector.load %arg2[%c8_49, %c0_50, %c0_51] : memref<9x4x128xbf16, #tpu.memory_space<vmem>>, vector<1x4x128xbf16>
    %50 = vector.shape_cast %49 : vector<1x4x128xbf16> to vector<4x128xbf16>
    %cst_52 = arith.constant dense<0.000000e+00> : vector<128x128xf32>
    %51 = tpu.matmul %48, %50, %cst_52 {dimension_numbers = #tpu.dot_dimension_numbers<[1], [0], [0], [1], [0, 0, 1, 1], [], []>} : vector<128x4xbf16>, vector<4x128xbf16>, vector<128x128xf32> -> vector<128x128xf32>
    %52 = arith.addf %46, %51 : vector<128x128xf32>
    %c0_53 = arith.constant 0 : index
    %c0_54 = arith.constant 0 : index
    %53 = vector.load %arg3[%c0_53, %c0_54] : memref<1x128xf32, #tpu.memory_space<vmem>>, vector<1x128xf32>
    %54 = vector.broadcast %53 : vector<1x128xf32> to vector<128x128xf32>
    %55 = arith.addf %52, %54 : vector<128x128xf32>
    %c0_55 = arith.constant 0 : index
    %c0_56 = arith.constant 0 : index
    %56 = vector.load %arg4[%c0_55, %c0_56] : memref<128x128xf32, #tpu.memory_space<vmem>>, vector<128x128xf32>
    tpu.vector_store %arg4[%c0_55, %c0_56], %55 {strides = array<i32>} : memref<128x128xf32, #tpu.memory_space<vmem>>, vector<128x128xf32>,
    return
  }
  func.func @transform_0(%arg0: i32) -> (i32, i32, i32) {
    %c0_i32 = arith.constant 0 : i32
    %c0_i32_0 = arith.constant 0 : i32
    %c0_i32_1 = arith.constant 0 : i32
    return %c0_i32, %arg0, %c0_i32_0 : i32, i32, i32
  }
  func.func @transform_1(%arg0: i32) -> (i32, i32, i32) {
    %c0_i32 = arith.constant 0 : i32
    %c0_i32_0 = arith.constant 0 : i32
    %c0_i32_1 = arith.constant 0 : i32
    %c0_i32_2 = arith.constant 0 : i32
    return %c0_i32, %c0_i32_0, %c0_i32_1 : i32, i32, i32
  }
  func.func @transform_2(%arg0: i32) -> (i32, i32) {
    %c0_i32 = arith.constant 0 : i32
    %c0_i32_0 = arith.constant 0 : i32
    %c0_i32_1 = arith.constant 0 : i32
    return %c0_i32, %c0_i32_0 : i32, i32
  }
  func.func @transform_3(%arg0: i32) -> (i32, i32) {
    %c0_i32 = arith.constant 0 : i32
    %c0_i32_0 = arith.constant 0 : i32
    return %arg0, %c0_i32 : i32, i32
  }
}

</mosaic_0001>

<llo_original>
// kernel: tpu_custom_call.1
$region0: #{tpu_custom_call.1}
  #allocation0 [shape = 'u32[]', space=smem, size = 0x4, offset = 0x4, fixed_abs, tag = 'smem constant byte address 0x4 - core index']
  #allocation1 [shape = 'u32[144,128]{1,0:T(1,128)}', space=vmem, size = 0x12000, scoped, tag = 'internal scratch']
  %s0 = inlined_call_operand.vmem [shape: bf16[9,128,4], index: 0, kind: input, shape index: {}]
  %s1 = inlined_call_operand.vmem [shape: bf16[9,4,128], index: 1, kind: input, shape index: {}]
  %s2 = inlined_call_operand.vmem [shape: f32[1,128], index: 2, kind: input, shape index: {}]
  %s3 = inlined_call_operand.hbm [shape: f32[128,128], index: 3, kind: output, shape index: {}]
  %s4 = sld [smem:[#allocation0]]
  $region22: #{tpu_custom_call.1} parent=0
    _
  %s6 = ssub.s32 1, %s4
  %s7 = scalar_select 0, %s6, %s4
  $region1: #{tpu_custom_call.1} parent=0
    #allocation2 [shape = 'u8[65536]{0}', space=vmem, size = 0x10000, scoped, tag = 'output window, operand 0, single buffered']
    #allocation3 [shape = 's32[1]{0}', space=sflag, size = 0x4, scoped, tag = 'scoped memory for tpu_custom_call.1']
    %8 = vsyncpa [#allocation3], 0
    // Predicated region
    $region2: #{tpu_custom_call.1} parent=1 // pred_check
      _
    $region3: #{tpu_custom_call.1} parent=1 // pred_check_branch
      %10 = sbr.rel (0) target = $region5
    $region4: #{tpu_custom_call.1} parent=1 // pred_region
      _
    $region5: #{tpu_custom_call.1} parent=1 // pred_fallthru
      _
    // Predicated region
    $region6: #{tpu_custom_call.1} parent=1 // pred_check
      _
    $region7: #{tpu_custom_call.1} parent=1 // pred_check_branch
      %12 = sbr.rel (0) target = $region9
    $region8: #{tpu_custom_call.1} parent=1 // pred_region
      _
    $region9: #{tpu_custom_call.1} parent=1 // pred_fallthru
      _
    // Predicated region
    $region10: #{tpu_custom_call.1} parent=1 // pred_check
      _
    $region11: #{tpu_custom_call.1} parent=1 // pred_check_branch
      %14 = sbr.rel (0) target = $region13
    $region12: #{tpu_custom_call.1} parent=1 // pred_region
      _
    $region13: #{tpu_custom_call.1} parent=1 // pred_fallthru
      _
    %v16 = vld [vmem:[%s0] sm:$0xf]
    %v17 = vld [vmem:[%s0 + $0x4] sm:$0xf]
    %v18 = vld [vmem:[%s0 + $0x8] sm:$0xf]
    %v19 = vld [vmem:[%s0 + $0xc] sm:$0xf]
    %v20 = vld [vmem:[%s0 + $0x10] sm:$0xf]
    %v21 = vld [vmem:[%s0 + $0x14] sm:$0xf]
    %v22 = vld [vmem:[%s0 + $0x18] sm:$0xf]
    %v23 = vld [vmem:[%s0 + $0x1c] sm:$0xf]
    %v24 = vld [vmem:[%s0 + $0x20] sm:$0xf]
    %v25 = vld [vmem:[%s0 + $0x24] sm:$0xf]
    %v26 = vld [vmem:[%s0 + $0x28] sm:$0xf]
    %v27 = vld [vmem:[%s0 + $0x2c] sm:$0xf]
    %v28 = vld [vmem:[%s0 + $0x30] sm:$0xf]
    %v29 = vld [vmem:[%s0 + $0x34] sm:$0xf]
    %v30 = vld [vmem:[%s0 + $0x38] sm:$0xf]
    %v31 = vld [vmem:[%s0 + $0x3c] sm:$0xf]
    %v32 = vld [vmem:[%s1] sm:$0x3]
    %s33 = scalar_lea.vmem %s0, 64
    %v34 = vld [vmem:[%s33] sm:$0xf]
    %v35 = vld [vmem:[%s33 + $0x4] sm:$0xf]
    %v36 = vld [vmem:[%s33 + $0x8] sm:$0xf]
    %v37 = vld [vmem:[%s33 + $0xc] sm:$0xf]
    %v38 = vld [vmem:[%s33 + $0x10] sm:$0xf]
    %v39 = vld [vmem:[%s33 + $0x14] sm:$0xf]
    %v40 = vld [vmem:[%s33 + $0x18] sm:$0xf]
    %v41 = vld [vmem:[%s33 + $0x1c] sm:$0xf]
    %v42 = vld [vmem:[%s33 + $0x20] sm:$0xf]
    %v43 = vld [vmem:[%s33 + $0x24] sm:$0xf]
    %v44 = vld [vmem:[%s33 + $0x28] sm:$0xf]
    %v45 = vld [vmem:[%s33 + $0x2c] sm:$0xf]
    %v46 = vld [vmem:[%s33 + $0x30] sm:$0xf]
    %v47 = vld [vmem:[%s33 + $0x34] sm:$0xf]
    %v48 = vld [vmem:[%s33 + $0x38] sm:$0xf]
    %v49 = vld [vmem:[%s33 + $0x3c] sm:$0xf]
    %s50 = scalar_lea.vmem %s1, 2
    %v51 = vld [vmem:[%s50] sm:$0x3]
    %v68 = vunpack.c.l.b16 %v34
    %v69 = vunpack.c.l.b16 %v35
    %v70 = vunpack.c.l.b16 %v36
    %v71 = vunpack.c.l.b16 %v37
    %v72 = vunpack.c.l.b16 %v38
    %v73 = vunpack.c.l.b16 %v39
    %v74 = vunpack.c.l.b16 %v40
    %v75 = vunpack.c.l.b16 %v41
    %v76 = vunpack.c.l.b16 %v42
    %v77 = vunpack.c.l.b16 %v43
    %v78 = vunpack.c.l.b16 %v44
    %v79 = vunpack.c.l.b16 %v45
    %v80 = vunpack.c.l.b16 %v46
    %v81 = vunpack.c.l.b16 %v47
    %v82 = vunpack.c.l.b16 %v48
    %v83 = vunpack.c.l.b16 %v49
    %v84 = vpack.c.b16 %v69, %v68
    %v85 = vpack.c.b16 %v71, %v70
    %v86 = vpack.c.b16 %v73, %v72
    %v87 = vpack.c.b16 %v75, %v74
    %v88 = vpack.c.b16 %v77, %v76
    %v89 = vpack.c.b16 %v79, %v78
    %v90 = vpack.c.b16 %v81, %v80
    %v91 = vpack.c.b16 %v83, %v82
    %vm92 = vcmask 31744
    %v94 = vsel %vm92, %v84, 0
    %v97 = vsel %vm92, %v85, 0
    %v100 = vsel %vm92, %v86, 0
    %v103 = vsel %vm92, %v87, 0
    %v106 = vsel %vm92, %v88, 0
    %v109 = vsel %vm92, %v89, 0
    %v112 = vsel %vm92, %v90, 0
    %v115 = vsel %vm92, %v91, 0
    %vm117 = vcmask 1041408
    %v119 = vsel %vm117, %v51, 0
    %121 = vmatprep.subr.bf16.mxu0 0
    %122 = vmatpush1.bf16.msra.mxu0 %v119
    %123 = vmatprep.subr.bf16.mxu0 0
    %124 = vmatpush1.bf16.msra.mxu0 0
    %125 = vmatprep.subr.bf16.mxu0 0
    %126 = vmatpush1.bf16.msra.mxu0 0
    %127 = vmatprep.subr.bf16.mxu0 0
    %128 = vmatpush1.bf16.msra.mxu0 0
    %129 = vmatprep.subr.bf16.mxu0 0
    %130 = vmatpush1.bf16.msra.mxu0 0
    %131 = vmatprep.subr.bf16.mxu0 0
    %132 = vmatpush1.bf16.msra.mxu0 0
    %133 = vmatprep.subr.bf16.mxu0 0
    %134 = vmatpush1.bf16.msra.mxu0 0
    %135 = vmatprep.subr.bf16.mxu0 0
    %136 = vmatpush1.bf16.msra.mxu0 0
    %137 = vmatprep.subr.bf16.mxu0 0
    %138 = vmatpush1.bf16.msra.mxu0 0
    %139 = vmatprep.subr.bf16.mxu0 0
    %140 = vmatpush1.bf16.msra.mxu0 0
    %141 = vmatprep.subr.bf16.mxu0 0
    %142 = vmatpush1.bf16.msra.mxu0 0
    %143 = vmatprep.subr.bf16.mxu0 0
    %144 = vmatpush1.bf16.msra.mxu0 0
    %145 = vmatprep.subr.bf16.mxu0 0
    %146 = vmatpush1.bf16.msra.mxu0 0
    %147 = vmatprep.subr.bf16.mxu0 0
    %148 = vmatpush1.bf16.msra.mxu0 0
    %149 = vmatprep.subr.bf16.mxu0 0
    %150 = vmatpush1.bf16.msra.mxu0 0
    %151 = vmatprep.subr.bf16.mxu0 0
    %152 = vmatpush1.bf16.msra.mxu0 0
    %153 = vmatprep.mubr.bf16.mxu0 0
    %154 = vmatmul.mubr.bf16.gmra.mrb[0].mxu0 %v94
    %v155 = vpop.f32.mrb[0].mxu0
    %v156 = vadd.f32 0.0, %v155
    %v157 = vpop.f32.mrb[0].mxu0
    %v158 = vpop.f32.mrb[0].mxu0
    %v159 = vadd.f32 0.0, %v158
    %v160 = vpop.f32.mrb[0].mxu0
    %161 = vmatprep.mubr.bf16.mxu0 0
    %162 = vmatmul.mubr.bf16.gmra.mrb[0].mxu0 %v97
    %v163 = vpop.f32.mrb[0].mxu0
    %v164 = vadd.f32 0.0, %v163
    %v165 = vpop.f32.mrb[0].mxu0
    %v166 = vpop.f32.mrb[0].mxu0
    %v167 = vadd.f32 0.0, %v166
    %v168 = vpop.f32.mrb[0].mxu0
    %169 = vmatprep.mubr.bf16.mxu0 0
    %170 = vmatmul.mubr.bf16.gmra.mrb[0].mxu0 %v100
    %v171 = vpop.f32.mrb[0].mxu0
    %v172 = vadd.f32 0.0, %v171
    %v173 = vpop.f32.mrb[0].mxu0
    %v174 = vpop.f32.mrb[0].mxu0
    %v175 = vadd.f32 0.0, %v174
    %v176 = vpop.f32.mrb[0].mxu0
    %177 = vmatprep.mubr.bf16.mxu0 0
    %178 = vmatmul.mubr.bf16.gmra.mrb[0].mxu0 %v103
    %v179 = vpop.f32.mrb[0].mxu0
    %v180 = vadd.f32 0.0, %v179
    %v181 = vpop.f32.mrb[0].mxu0
    %v182 = vpop.f32.mrb[0].mxu0
    %v183 = vadd.f32 0.0, %v182
    %v184 = vpop.f32.mrb[0].mxu0
    %185 = vmatprep.mubr.bf16.mxu0 0
    %186 = vmatmul.mubr.bf16.gmra.mrb[0].mxu0 %v106
    %v187 = vpop.f32.mrb[0].mxu0
    %v188 = vadd.f32 0.0, %v187
    %v189 = vpop.f32.mrb[0].mxu0
    %v190 = vpop.f32.mrb[0].mxu0
    %v191 = vadd.f32 0.0, %v190
    %v192 = vpop.f32.mrb[0].mxu0
    %193 = vmatprep.mubr.bf16.mxu0 0
    %194 = vmatmul.mubr.bf16.gmra.mrb[0].mxu0 %v109
    %v195 = vpop.f32.mrb[0].mxu0
    %v196 = vadd.f32 0.0, %v195
    %v197 = vpop.f32.mrb[0].mxu0
    %v198 = vpop.f32.mrb[0].mxu0
    %v199 = vadd.f32 0.0, %v198
    %v200 = vpop.f32.mrb[0].mxu0
    %201 = vmatprep.mubr.bf16.mxu0 0
    %202 = vmatmul.mubr.bf16.gmra.mrb[0].mxu0 %v112
    %v203 = vpop.f32.mrb[0].mxu0
    %v204 = vadd.f32 0.0, %v203
    %v205 = vpop.f32.mrb[0].mxu0
    %v206 = vpop.f32.mrb[0].mxu0
    %v207 = vadd.f32 0.0, %v206
    %v208 = vpop.f32.mrb[0].mxu0
    %209 = vmatprep.mubr.bf16.mxu0 0
    %210 = vmatmul.mubr.bf16.gmra.mrb[0].mxu0 %v115
    %v211 = vpop.f32.mrb[0].mxu0
    %v212 = vadd.f32 0.0, %v211
    %v213 = vpop.f32.mrb[0].mxu0
    %v214 = vpop.f32.mrb[0].mxu0
    %v215 = vadd.f32 0.0, %v214
    %v216 = vpop.f32.mrb[0].mxu0
    %217 = vdwg.mxu0
    %v234 = vunpack.c.l.b16 %v16
    %v235 = vunpack.c.l.b16 %v17
    %v236 = vunpack.c.l.b16 %v18
    %v237 = vunpack.c.l.b16 %v19
    %v238 = vunpack.c.l.b16 %v20
    %v239 = vunpack.c.l.b16 %v21
    %v240 = vunpack.c.l.b16 %v22
    %v241 = vunpack.c.l.b16 %v23
    %v242 = vunpack.c.l.b16 %v24
    %v243 = vunpack.c.l.b16 %v25
    %v244 = vunpack.c.l.b16 %v26
    %v245 = vunpack.c.l.b16 %v27
    %v246 = vunpack.c.l.b16 %v28
    %v247 = vunpack.c.l.b16 %v29
    %v248 = vunpack.c.l.b16 %v30
    %v249 = vunpack.c.l.b16 %v31
    %v250 = vpack.c.b16 %v235, %v234
    %v251 = vpack.c.b16 %v237, %v236
    %v252 = vpack.c.b16 %v239, %v238
    %v253 = vpack.c.b16 %v241, %v240
    %v254 = vpack.c.b16 %v243, %v242
    %v255 = vpack.c.b16 %v245, %v244
    %v256 = vpack.c.b16 %v247, %v246
    %v257 = vpack.c.b16 %v249, %v248
    %v259 = vsel %vm92, %v250, 0
    %v262 = vsel %vm92, %v251, 0
    %v265 = vsel %vm92, %v252, 0
    %v268 = vsel %vm92, %v253, 0
    %v271 = vsel %vm92, %v254, 0
    %v274 = vsel %vm92, %v255, 0
    %v277 = vsel %vm92, %v256, 0
    %v280 = vsel %vm92, %v257, 0
    %v283 = vsel %vm117, %v32, 0
    %285 = vmatprep.subr.bf16.mxu0 0
    %286 = vmatpush1.bf16.msra.mxu0 %v283
    %287 = vmatprep.subr.bf16.mxu0 0
    %288 = vmatpush1.bf16.msra.mxu0 0
    %289 = vmatprep.subr.bf16.mxu0 0
    %290 = vmatpush1.bf16.msra.mxu0 0
    %291 = vmatprep.subr.bf16.mxu0 0
    %292 = vmatpush1.bf16.msra.mxu0 0
    %293 = vmatprep.subr.bf16.mxu0 0
    %294 = vmatpush1.bf16.msra.mxu0 0
    %295 = vmatprep.subr.bf16.mxu0 0
    %296 = vmatpush1.bf16.msra.mxu0 0
    %297 = vmatprep.subr.bf16.mxu0 0
    %298 = vmatpush1.bf16.msra.mxu0 0
    %299 = vmatprep.subr.bf16.mxu0 0
    %300 = vmatpush1.bf16.msra.mxu0 0
    %301 = vmatprep.subr.bf16.mxu0 0
    %302 = vmatpush1.bf16.msra.mxu0 0
    %303 = vmatprep.subr.bf16.mxu0 0
    %304 = vmatpush1.bf16.msra.mxu0 0
    %305 = vmatprep.subr.bf16.mxu0 0
    %306 = vmatpush1.bf16.msra.mxu0 0
    %307 = vmatprep.subr.bf16.mxu0 0
    %308 = vmatpush1.bf16.msra.mxu0 0
    %309 = vmatprep.subr.bf16.mxu0 0
    %310 = vmatpush1.bf16.msra.mxu0 0
    %311 = vmatprep.subr.bf16.mxu0 0
    %312 = vmatpush1.bf16.msra.mxu0 0
    %313 = vmatprep.subr.bf16.mxu0 0
    %314 = vmatpush1.bf16.msra.mxu0 0
    %315 = vmatprep.subr.bf16.mxu0 0
    %316 = vmatpush1.bf16.msra.mxu0 0
    %317 = vmatprep.mubr.bf16.mxu0 0
    %318 = vmatmul.mubr.bf16.gmra.mrb[0].mxu0 %v259
    %v319 = vpop.f32.mrb[0].mxu0
    %v320 = vadd.f32 %v156, %v319
    %v321 = vpop.f32.mrb[0].mxu0
    %v322 = vpop.f32.mrb[0].mxu0
    %v323 = vadd.f32 %v159, %v322
    %v324 = vpop.f32.mrb[0].mxu0
    %325 = vmatprep.mubr.bf16.mxu0 0
    %326 = vmatmul.mubr.bf16.gmra.mrb[0].mxu0 %v262
    %v327 = vpop.f32.mrb[0].mxu0
    %v328 = vadd.f32 %v164, %v327
    %v329 = vpop.f32.mrb[0].mxu0
    %v330 = vpop.f32.mrb[0].mxu0
    %v331 = vadd.f32 %v167, %v330
    %v332 = vpop.f32.mrb[0].mxu0
    %333 = vmatprep.mubr.bf16.mxu0 0
    %334 = vmatmul.mubr.bf16.gmra.mrb[0].mxu0 %v265
    %v335 = vpop.f32.mrb[0].mxu0
    %v336 = vadd.f32 %v172, %v335
    %v337 = vpop.f32.mrb[0].mxu0
    %v338 = vpop.f32.mrb[0].mxu0
    %v339 = vadd.f32 %v175, %v338
    %v340 = vpop.f32.mrb[0].mxu0
    %341 = vmatprep.mubr.bf16.mxu0 0
    %342 = vmatmul.mubr.bf16.gmra.mrb[0].mxu0 %v268
    %v343 = vpop.f32.mrb[0].mxu0
    %v344 = vadd.f32 %v180, %v343
    %v345 = vpop.f32.mrb[0].mxu0
    %v346 = vpop.f32.mrb[0].mxu0
    %v347 = vadd.f32 %v183, %v346
    %v348 = vpop.f32.mrb[0].mxu0
    %349 = vmatprep.mubr.bf16.mxu0 0
    %350 = vmatmul.mubr.bf16.gmra.mrb[0].mxu0 %v271
    %v351 = vpop.f32.mrb[0].mxu0
    %v352 = vadd.f32 %v188, %v351
    %v353 = vpop.f32.mrb[0].mxu0
    %v354 = vpop.f32.mrb[0].mxu0
    %v355 = vadd.f32 %v191, %v354
    %v356 = vpop.f32.mrb[0].mxu0
    %357 = vmatprep.mubr.bf16.mxu0 0
    %358 = vmatmul.mubr.bf16.gmra.mrb[0].mxu0 %v274
    %v359 = vpop.f32.mrb[0].mxu0
    %v360 = vadd.f32 %v196, %v359
    %v361 = vpop.f32.mrb[0].mxu0
    %v362 = vpop.f32.mrb[0].mxu0
    %v363 = vadd.f32 %v199, %v362
    %v364 = vpop.f32.mrb[0].mxu0
    %365 = vmatprep.mubr.bf16.mxu0 0
    %366 = vmatmul.mubr.bf16.gmra.mrb[0].mxu0 %v277
    %v367 = vpop.f32.mrb[0].mxu0
    %v368 = vadd.f32 %v204, %v367
    %v369 = vpop.f32.mrb[0].mxu0
    %v370 = vpop.f32.mrb[0].mxu0
    %v371 = vadd.f32 %v207, %v370
    %v372 = vpop.f32.mrb[0].mxu0
    %373 = vmatprep.mubr.bf16.mxu0 0
    %374 = vmatmul.mubr.bf16.gmra.mrb[0].mxu0 %v280
    %v375 = vpop.f32.mrb[0].mxu0
    %v376 = vadd.f32 %v212, %v375
    %v377 = vpop.f32.mrb[0].mxu0
    %v378 = vpop.f32.mrb[0].mxu0
    %v379 = vadd.f32 %v215, %v378
    %v380 = vpop.f32.mrb[0].mxu0
    %381 = vdwg.mxu0
    %s382 = scalar_lea.vmem %s0, 128
    %v383 = vld [vmem:[%s382] sm:$0xf]
    %v384 = vld [vmem:[%s382 + $0x4] sm:$0xf]
    %v385 = vld [vmem:[%s382 + $0x8] sm:$0xf]
    %v386 = vld [vmem:[%s382 + $0xc] sm:$0xf]
    %v387 = vld [vmem:[%s382 + $0x10] sm:$0xf]
    %v388 = vld [vmem:[%s382 + $0x14] sm:$0xf]
    %v389 = vld [vmem:[%s382 + $0x18] sm:$0xf]
    %v390 = vld [vmem:[%s382 + $0x1c] sm:$0xf]
    %v391 = vld [vmem:[%s382 + $0x20] sm:$0xf]
    %v392 = vld [vmem:[%s382 + $0x24] sm:$0xf]
    %v393 = vld [vmem:[%s382 + $0x28] sm:$0xf]
    %v394 = vld [vmem:[%s382 + $0x2c] sm:$0xf]
    %v395 = vld [vmem:[%s382 + $0x30] sm:$0xf]
    %v396 = vld [vmem:[%s382 + $0x34] sm:$0xf]
    %v397 = vld [vmem:[%s382 + $0x38] sm:$0xf]
    %v398 = vld [vmem:[%s382 + $0x3c] sm:$0xf]
    %s399 = scalar_lea.vmem %s1, 4
    %v400 = vld [vmem:[%s399] sm:$0x3]
    %v417 = vunpack.c.l.b16 %v383
    %v418 = vunpack.c.l.b16 %v384
    %v419 = vunpack.c.l.b16 %v385
    %v420 = vunpack.c.l.b16 %v386
    %v421 = vunpack.c.l.b16 %v387
    %v422 = vunpack.c.l.b16 %v388
    %v423 = vunpack.c.l.b16 %v389
    %v424 = vunpack.c.l.b16 %v390
    %v425 = vunpack.c.l.b16 %v391
    %v426 = vunpack.c.l.b16 %v392
    %v427 = vunpack.c.l.b16 %v393
    %v428 = vunpack.c.l.b16 %v394
    %v429 = vunpack.c.l.b16 %v395
    %v430 = vunpack.c.l.b16 %v396
    %v431 = vunpack.c.l.b16 %v397
    %v432 = vunpack.c.l.b16 %v398
    %v433 = vpack.c.b16 %v418, %v417
    %v434 = vpack.c.b16 %v420, %v419
    %v435 = vpack.c.b16 %v422, %v421
    %v436 = vpack.c.b16 %v424, %v423
    %v437 = vpack.c.b16 %v426, %v425
    %v438 = vpack.c.b16 %v428, %v427
    %v439 = vpack.c.b16 %v430, %v429
    %v440 = vpack.c.b16 %v432, %v431
    %v442 = vsel %vm92, %v433, 0
    %v445 = vsel %vm92, %v434, 0
    %v448 = vsel %vm92, %v435, 0
    %v451 = vsel %vm92, %v436, 0
    %v454 = vsel %vm92, %v437, 0
    %v457 = vsel %vm92, %v438, 0
    %v460 = vsel %vm92, %v439, 0
    %v463 = vsel %vm92, %v440, 0
    %v466 = vsel %vm117, %v400, 0
    %468 = vmatprep.subr.bf16.mxu0 0
    %469 = vmatpush1.bf16.msra.mxu0 %v466
    %470 = vmatprep.subr.bf16.mxu0 0
    %471 = vmatpush1.bf16.msra.mxu0 0
    %472 = vmatprep.subr.bf16.mxu0 0
    %473 = vmatpush1.bf16.msra.mxu0 0
    %474 = vmatprep.subr.bf16.mxu0 0
    %475 = vmatpush1.bf16.msra.mxu0 0
    %476 = vmatprep.subr.bf16.mxu0 0
    %477 = vmatpush1.bf16.msra.mxu0 0
    %478 = vmatprep.subr.bf16.mxu0 0
    %479 = vmatpush1.bf16.msra.mxu0 0
    %480 = vmatprep.subr.bf16.mxu0 0
    %481 = vmatpush1.bf16.msra.mxu0 0
    %482 = vmatprep.subr.bf16.mxu0 0
    %483 = vmatpush1.bf16.msra.mxu0 0
    %484 = vmatprep.subr.bf16.mxu0 0
    %485 = vmatpush1.bf16.msra.mxu0 0
    %486 = vmatprep.subr.bf16.mxu0 0
    %487 = vmatpush1.bf16.msra.mxu0 0
    %488 = vmatprep.subr.bf16.mxu0 0
    %489 = vmatpush1.bf16.msra.mxu0 0
    %490 = vmatprep.subr.bf16.mxu0 0
    %491 = vmatpush1.bf16.msra.mxu0 0
    %492 = vmatprep.subr.bf16.mxu0 0
    %493 = vmatpush1.bf16.msra.mxu0 0
    %494 = vmatprep.subr.bf16.mxu0 0
    %495 = vmatpush1.bf16.msra.mxu0 0
    %496 = vmatprep.subr.bf16.mxu0 0
    %497 = vmatpush1.bf16.msra.mxu0 0
    %498 = vmatprep.subr.bf16.mxu0 0
    %499 = vmatpush1.bf16.msra.mxu0 0
    %500 = vmatprep.mubr.bf16.mxu0 0
    %501 = vmatmul.mubr.bf16.gmra.mrb[0].mxu0 %v442
    %v502 = vpop.f32.mrb[0].mxu0
    %v503 = vadd.f32 0.0, %v502
    %v504 = vpop.f32.mrb[0].mxu0
    %v505 = vpop.f32.mrb[0].mxu0
    %v506 = vadd.f32 0.0, %v505
    %v507 = vpop.f32.mrb[0].mxu0
    %508 = vmatprep.mubr.bf16.mxu0 0
    %509 = vmatmul.mubr.bf16.gmra.mrb[0].mxu0 %v445
    %v510 = vpop.f32.mrb[0].mxu0
    %v511 = vadd.f32 0.0, %v510
    %v512 = vpop.f32.mrb[0].mxu0
    %v513 = vpop.f32.mrb[0].mxu0
    %v514 = vadd.f32 0.0, %v513
    %v515 = vpop.f32.mrb[0].mxu0
    %516 = vmatprep.mubr.bf16.mxu0 0
    %517 = vmatmul.mubr.bf16.gmra.mrb[0].mxu0 %v448
    %v518 = vpop.f32.mrb[0].mxu0
    %v519 = vadd.f32 0.0, %v518
    %v520 = vpop.f32.mrb[0].mxu0
    %v521 = vpop.f32.mrb[0].mxu0
    %v522 = vadd.f32 0.0, %v521
    %v523 = vpop.f32.mrb[0].mxu0
    %524 = vmatprep.mubr.bf16.mxu0 0
    %525 = vmatmul.mubr.bf16.gmra.mrb[0].mxu0 %v451
    %v526 = vpop.f32.mrb[0].mxu0
    %v527 = vadd.f32 0.0, %v526
    %v528 = vpop.f32.mrb[0].mxu0
    %v529 = vpop.f32.mrb[0].mxu0
    %v530 = vadd.f32 0.0, %v529
    %v531 = vpop.f32.mrb[0].mxu0
    %532 = vmatprep.mubr.bf16.mxu0 0
    %533 = vmatmul.mubr.bf16.gmra.mrb[0].mxu0 %v454
    %v534 = vpop.f32.mrb[0].mxu0
    %v535 = vadd.f32 0.0, %v534
    %v536 = vpop.f32.mrb[0].mxu0
    %v537 = vpop.f32.mrb[0].mxu0
    %v538 = vadd.f32 0.0, %v537
    %v539 = vpop.f32.mrb[0].mxu0
    %540 = vmatprep.mubr.bf16.mxu0 0
    %541 = vmatmul.mubr.bf16.gmra.mrb[0].mxu0 %v457
    %v542 = vpop.f32.mrb[0].mxu0
    %v543 = vadd.f32 0.0, %v542
    %v544 = vpop.f32.mrb[0].mxu0
    %v545 = vpop.f32.mrb[0].mxu0
    %v546 = vadd.f32 0.0, %v545
    %v547 = vpop.f32.mrb[0].mxu0
    %548 = vmatprep.mubr.bf16.mxu0 0
    %549 = vmatmul.mubr.bf16.gmra.mrb[0].mxu0 %v460
    %v550 = vpop.f32.mrb[0].mxu0
    %v551 = vadd.f32 0.0, %v550
    %v552 = vpop.f32.mrb[0].mxu0
    %v553 = vpop.f32.mrb[0].mxu0
    %v554 = vadd.f32 0.0, %v553
    %v555 = vpop.f32.mrb[0].mxu0
    %556 = vmatprep.mubr.bf16.mxu0 0
    %557 = vmatmul.mubr.bf16.gmra.mrb[0].mxu0 %v463
    %v558 = vpop.f32.mrb[0].mxu0
    %v559 = vadd.f32 0.0, %v558
    %v560 = vpop.f32.mrb[0].mxu0
    %v561 = vpop.f32.mrb[0].mxu0
    %v562 = vadd.f32 0.0, %v561
    %v563 = vpop.f32.mrb[0].mxu0
    %564 = vdwg.mxu0
    %v565 = vadd.f32 %v320, %v503
    %v566 = vadd.f32 %v323, %v506
    %v567 = vadd.f32 %v328, %v511
    %v568 = vadd.f32 %v331, %v514
    %v569 = vadd.f32 %v336, %v519
    %v570 = vadd.f32 %v339, %v522
    %v571 = vadd.f32 %v344, %v527
    %v572 = vadd.f32 %v347, %v530
    %v573 = vadd.f32 %v352, %v535
    %v574 = vadd.f32 %v355, %v538
    %v575 = vadd.f32 %v360, %v543
    %v576 = vadd.f32 %v363, %v546
    %v577 = vadd.f32 %v368, %v551
    %v578 = vadd.f32 %v371, %v554
    %v579 = vadd.f32 %v376, %v559
    %v580 = vadd.f32 %v379, %v562
    %s581 = scalar_lea.vmem %s0, 192
    %v582 = vld [vmem:[%s581] sm:$0xf]
    %v583 = vld [vmem:[%s581 + $0x4] sm:$0xf]
    %v584 = vld [vmem:[%s581 + $0x8] sm:$0xf]
    %v585 = vld [vmem:[%s581 + $0xc] sm:$0xf]
    %v586 = vld [vmem:[%s581 + $0x10] sm:$0xf]
    %v587 = vld [vmem:[%s581 + $0x14] sm:$0xf]
    %v588 = vld [vmem:[%s581 + $0x18] sm:$0xf]
    %v589 = vld [vmem:[%s581 + $0x1c] sm:$0xf]
    %v590 = vld [vmem:[%s581 + $0x20] sm:$0xf]
    %v591 = vld [vmem:[%s581 + $0x24] sm:$0xf]
    %v592 = vld [vmem:[%s581 + $0x28] sm:$0xf]
    %v593 = vld [vmem:[%s581 + $0x2c] sm:$0xf]
    %v594 = vld [vmem:[%s581 + $0x30] sm:$0xf]
    %v595 = vld [vmem:[%s581 + $0x34] sm:$0xf]
    %v596 = vld [vmem:[%s581 + $0x38] sm:$0xf]
    %v597 = vld [vmem:[%s581 + $0x3c] sm:$0xf]
    %s598 = scalar_lea.vmem %s1, 6
    %v599 = vld [vmem:[%s598] sm:$0x3]
    %v616 = vunpack.c.l.b16 %v582
    %v617 = vunpack.c.l.b16 %v583
    %v618 = vunpack.c.l.b16 %v584
    %v619 = vunpack.c.l.b16 %v585
    %v620 = vunpack.c.l.b16 %v586
    %v621 = vunpack.c.l.b16 %v587
    %v622 = vunpack.c.l.b16 %v588
    %v623 = vunpack.c.l.b16 %v589
    %v624 = vunpack.c.l.b16 %v590
    %v625 = vunpack.c.l.b16 %v591
    %v626 = vunpack.c.l.b16 %v592
    %v627 = vunpack.c.l.b16 %v593
    %v628 = vunpack.c.l.b16 %v594
    %v629 = vunpack.c.l.b16 %v595
    %v630 = vunpack.c.l.b16 %v596
    %v631 = vunpack.c.l.b16 %v597
    %v632 = vpack.c.b16 %v617, %v616
    %v633 = vpack.c.b16 %v619, %v618
    %v634 = vpack.c.b16 %v621, %v620
    %v635 = vpack.c.b16 %v623, %v622
    %v636 = vpack.c.b16 %v625, %v624
    %v637 = vpack.c.b16 %v627, %v626
    %v638 = vpack.c.b16 %v629, %v628
    %v639 = vpack.c.b16 %v631, %v630
    %v641 = vsel %vm92, %v632, 0
    %v644 = vsel %vm92, %v633, 0
    %v647 = vsel %vm92, %v634, 0
    %v650 = vsel %vm92, %v635, 0
    %v653 = vsel %vm92, %v636, 0
    %v656 = vsel %vm92, %v637, 0
    %v659 = vsel %vm92, %v638, 0
    %v662 = vsel %vm92, %v639, 0
    %v665 = vsel %vm117, %v599, 0
    %667 = vmatprep.subr.bf16.mxu0 0
    %668 = vmatpush1.bf16.msra.mxu0 %v665
    %669 = vmatprep.subr.bf16.mxu0 0
    %670 = vmatpush1.bf16.msra.mxu0 0
    %671 = vmatprep.subr.bf16.mxu0 0
    %672 = vmatpush1.bf16.msra.mxu0 0
    %673 = vmatprep.subr.bf16.mxu0 0
    %674 = vmatpush1.bf16.msra.mxu0 0
    %675 = vmatprep.subr.bf16.mxu0 0
    %676 = vmatpush1.bf16.msra.mxu0 0
    %677 = vmatprep.subr.bf16.mxu0 0
    %678 = vmatpush1.bf16.msra.mxu0 0
    %679 = vmatprep.subr.bf16.mxu0 0
    %680 = vmatpush1.bf16.msra.mxu0 0
    %681 = vmatprep.subr.bf16.mxu0 0
    %682 = vmatpush1.bf16.msra.mxu0 0
    %683 = vmatprep.subr.bf16.mxu0 0
    %684 = vmatpush1.bf16.msra.mxu0 0
    %685 = vmatprep.subr.bf16.mxu0 0
    %686 = vmatpush1.bf16.msra.mxu0 0
    %687 = vmatprep.subr.bf16.mxu0 0
    %688 = vmatpush1.bf16.msra.mxu0 0
    %689 = vmatprep.subr.bf16.mxu0 0
    %690 = vmatpush1.bf16.msra.mxu0 0
    %691 = vmatprep.subr.bf16.mxu0 0
    %692 = vmatpush1.bf16.msra.mxu0 0
    %693 = vmatprep.subr.bf16.mxu0 0
    %694 = vmatpush1.bf16.msra.mxu0 0
    %695 = vmatprep.subr.bf16.mxu0 0
    %696 = vmatpush1.bf16.msra.mxu0 0
    %697 = vmatprep.subr.bf16.mxu0 0
    %698 = vmatpush1.bf16.msra.mxu0 0
    %699 = vmatprep.mubr.bf16.mxu0 0
    %700 = vmatmul.mubr.bf16.gmra.mrb[0].mxu0 %v641
    %v701 = vpop.f32.mrb[0].mxu0
    %v702 = vadd.f32 0.0, %v701
    %v703 = vpop.f32.mrb[0].mxu0
    %v704 = vpop.f32.mrb[0].mxu0
    %v705 = vadd.f32 0.0, %v704
    %v706 = vpop.f32.mrb[0].mxu0
    %707 = vmatprep.mubr.bf16.mxu0 0
    %708 = vmatmul.mubr.bf16.gmra.mrb[0].mxu0 %v644
    %v709 = vpop.f32.mrb[0].mxu0
    %v710 = vadd.f32 0.0, %v709
    %v711 = vpop.f32.mrb[0].mxu0
    %v712 = vpop.f32.mrb[0].mxu0
    %v713 = vadd.f32 0.0, %v712
    %v714 = vpop.f32.mrb[0].mxu0
    %715 = vmatprep.mubr.bf16.mxu0 0
    %716 = vmatmul.mubr.bf16.gmra.mrb[0].mxu0 %v647
    %v717 = vpop.f32.mrb[0].mxu0
    %v718 = vadd.f32 0.0, %v717
    %v719 = vpop.f32.mrb[0].mxu0
    %v720 = vpop.f32.mrb[0].mxu0
    %v721 = vadd.f32 0.0, %v720
    %v722 = vpop.f32.mrb[0].mxu0
    %723 = vmatprep.mubr.bf16.mxu0 0
    %724 = vmatmul.mubr.bf16.gmra.mrb[0].mxu0 %v650
    %v725 = vpop.f32.mrb[0].mxu0
    %v726 = vadd.f32 0.0, %v725
    %v727 = vpop.f32.mrb[0].mxu0
    %v728 = vpop.f32.mrb[0].mxu0
    %v729 = vadd.f32 0.0, %v728
    %v730 = vpop.f32.mrb[0].mxu0
    %731 = vmatprep.mubr.bf16.mxu0 0
    %732 = vmatmul.mubr.bf16.gmra.mrb[0].mxu0 %v653
    %v733 = vpop.f32.mrb[0].mxu0
    %v734 = vadd.f32 0.0, %v733
    %v735 = vpop.f32.mrb[0].mxu0
    %v736 = vpop.f32.mrb[0].mxu0
    %v737 = vadd.f32 0.0, %v736
    %v738 = vpop.f32.mrb[0].mxu0
    %739 = vmatprep.mubr.bf16.mxu0 0
    %740 = vmatmul.mubr.bf16.gmra.mrb[0].mxu0 %v656
    %v741 = vpop.f32.mrb[0].mxu0
    %v742 = vadd.f32 0.0, %v741
    %v743 = vpop.f32.mrb[0].mxu0
    %v744 = vpop.f32.mrb[0].mxu0
    %v745 = vadd.f32 0.0, %v744
    %v746 = vpop.f32.mrb[0].mxu0
    %747 = vmatprep.mubr.bf16.mxu0 0
    %748 = vmatmul.mubr.bf16.gmra.mrb[0].mxu0 %v659
    %v749 = vpop.f32.mrb[0].mxu0
    %v750 = vadd.f32 0.0, %v749
    %v751 = vpop.f32.mrb[0].mxu0
    %v752 = vpop.f32.mrb[0].mxu0
    %v753 = vadd.f32 0.0, %v752
    %v754 = vpop.f32.mrb[0].mxu0
    %755 = vmatprep.mubr.bf16.mxu0 0
    %756 = vmatmul.mubr.bf16.gmra.mrb[0].mxu0 %v662
    %v757 = vpop.f32.mrb[0].mxu0
    %v758 = vadd.f32 0.0, %v757
    %v759 = vpop.f32.mrb[0].mxu0
    %v760 = vpop.f32.mrb[0].mxu0
    %v761 = vadd.f32 0.0, %v760
    %v762 = vpop.f32.mrb[0].mxu0
    %763 = vdwg.mxu0
    %v764 = vadd.f32 %v565, %v702
    %v765 = vadd.f32 %v566, %v705
    %v766 = vadd.f32 %v567, %v710
    %v767 = vadd.f32 %v568, %v713
    %v768 = vadd.f32 %v569, %v718
    %v769 = vadd.f32 %v570, %v721
    %v770 = vadd.f32 %v571, %v726
    %v771 = vadd.f32 %v572, %v729
    %v772 = vadd.f32 %v573, %v734
    %v773 = vadd.f32 %v574, %v737
    %v774 = vadd.f32 %v575, %v742
    %v775 = vadd.f32 %v576, %v745
    %v776 = vadd.f32 %v577, %v750
    %v777 = vadd.f32 %v578, %v753
    %v778 = vadd.f32 %v579, %v758
    %v779 = vadd.f32 %v580, %v761
    %s780 = scalar_lea.vmem %s0, 256
    %v781 = vld [vmem:[%s780] sm:$0xf]
    %v782 = vld [vmem:[%s780 + $0x4] sm:$0xf]
    %v783 = vld [vmem:[%s780 + $0x8] sm:$0xf]
    %v784 = vld [vmem:[%s780 + $0xc] sm:$0xf]
    %v785 = vld [vmem:[%s780 + $0x10] sm:$0xf]
    %v786 = vld [vmem:[%s780 + $0x14] sm:$0xf]
    %v787 = vld [vmem:[%s780 + $0x18] sm:$0xf]
    %v788 = vld [vmem:[%s780 + $0x1c] sm:$0xf]
    %v789 = vld [vmem:[%s780 + $0x20] sm:$0xf]
    %v790 = vld [vmem:[%s780 + $0x24] sm:$0xf]
    %v791 = vld [vmem:[%s780 + $0x28] sm:$0xf]
    %v792 = vld [vmem:[%s780 + $0x2c] sm:$0xf]
    %v793 = vld [vmem:[%s780 + $0x30] sm:$0xf]
    %v794 = vld [vmem:[%s780 + $0x34] sm:$0xf]
    %v795 = vld [vmem:[%s780 + $0x38] sm:$0xf]
    %v796 = vld [vmem:[%s780 + $0x3c] sm:$0xf]
    %s797 = scalar_lea.vmem %s1, 8
    %v798 = vld [vmem:[%s797] sm:$0x3]
    %v815 = vunpack.c.l.b16 %v781
    %v816 = vunpack.c.l.b16 %v782
    %v817 = vunpack.c.l.b16 %v783
    %v818 = vunpack.c.l.b16 %v784
    %v819 = vunpack.c.l.b16 %v785
    %v820 = vunpack.c.l.b16 %v786
    %v821 = vunpack.c.l.b16 %v787
    %v822 = vunpack.c.l.b16 %v788
    %v823 = vunpack.c.l.b16 %v789
    %v824 = vunpack.c.l.b16 %v790
    %v825 = vunpack.c.l.b16 %v791
    %v826 = vunpack.c.l.b16 %v792
    %v827 = vunpack.c.l.b16 %v793
    %v828 = vunpack.c.l.b16 %v794
    %v829 = vunpack.c.l.b16 %v795
    %v830 = vunpack.c.l.b16 %v796
    %v831 = vpack.c.b16 %v816, %v815
    %v832 = vpack.c.b16 %v818, %v817
    %v833 = vpack.c.b16 %v820, %v819
    %v834 = vpack.c.b16 %v822, %v821
    %v835 = vpack.c.b16 %v824, %v823
    %v836 = vpack.c.b16 %v826, %v825
    %v837 = vpack.c.b16 %v828, %v827
    %v838 = vpack.c.b16 %v830, %v829
    %v840 = vsel %vm92, %v831, 0
    %v843 = vsel %vm92, %v832, 0
    %v846 = vsel %vm92, %v833, 0
    %v849 = vsel %vm92, %v834, 0
    %v852 = vsel %vm92, %v835, 0
    %v855 = vsel %vm92, %v836, 0
    %v858 = vsel %vm92, %v837, 0
    %v861 = vsel %vm92, %v838, 0
    %v864 = vsel %vm117, %v798, 0
    %866 = vmatprep.subr.bf16.mxu0 0
    %867 = vmatpush1.bf16.msra.mxu0 %v864
    %868 = vmatprep.subr.bf16.mxu0 0
    %869 = vmatpush1.bf16.msra.mxu0 0
    %870 = vmatprep.subr.bf16.mxu0 0
    %871 = vmatpush1.bf16.msra.mxu0 0
    %872 = vmatprep.subr.bf16.mxu0 0
    %873 = vmatpush1.bf16.msra.mxu0 0
    %874 = vmatprep.subr.bf16.mxu0 0
    %875 = vmatpush1.bf16.msra.mxu0 0
    %876 = vmatprep.subr.bf16.mxu0 0
    %877 = vmatpush1.bf16.msra.mxu0 0
    %878 = vmatprep.subr.bf16.mxu0 0
    %879 = vmatpush1.bf16.msra.mxu0 0
    %880 = vmatprep.subr.bf16.mxu0 0
    %881 = vmatpush1.bf16.msra.mxu0 0
    %882 = vmatprep.subr.bf16.mxu0 0
    %883 = vmatpush1.bf16.msra.mxu0 0
    %884 = vmatprep.subr.bf16.mxu0 0
    %885 = vmatpush1.bf16.msra.mxu0 0
    %886 = vmatprep.subr.bf16.mxu0 0
    %887 = vmatpush1.bf16.msra.mxu0 0
    %888 = vmatprep.subr.bf16.mxu0 0
    %889 = vmatpush1.bf16.msra.mxu0 0
    %890 = vmatprep.subr.bf16.mxu0 0
    %891 = vmatpush1.bf16.msra.mxu0 0
    %892 = vmatprep.subr.bf16.mxu0 0
    %893 = vmatpush1.bf16.msra.mxu0 0
    %894 = vmatprep.subr.bf16.mxu0 0
    %895 = vmatpush1.bf16.msra.mxu0 0
    %896 = vmatprep.subr.bf16.mxu0 0
    %897 = vmatpush1.bf16.msra.mxu0 0
    %898 = vmatprep.mubr.bf16.mxu0 0
    %899 = vmatmul.mubr.bf16.gmra.mrb[0].mxu0 %v840
    %v900 = vpop.f32.mrb[0].mxu0
    %v901 = vadd.f32 0.0, %v900
    %v902 = vpop.f32.mrb[0].mxu0
    %v903 = vpop.f32.mrb[0].mxu0
    %v904 = vadd.f32 0.0, %v903
    %v905 = vpop.f32.mrb[0].mxu0
    %906 = vmatprep.mubr.bf16.mxu0 0
    %907 = vmatmul.mubr.bf16.gmra.mrb[0].mxu0 %v843
    %v908 = vpop.f32.mrb[0].mxu0
    %v909 = vadd.f32 0.0, %v908
    %v910 = vpop.f32.mrb[0].mxu0
    %v911 = vpop.f32.mrb[0].mxu0
    %v912 = vadd.f32 0.0, %v911
    %v913 = vpop.f32.mrb[0].mxu0
    %914 = vmatprep.mubr.bf16.mxu0 0
    %915 = vmatmul.mubr.bf16.gmra.mrb[0].mxu0 %v846
    %v916 = vpop.f32.mrb[0].mxu0
    %v917 = vadd.f32 0.0, %v916
    %v918 = vpop.f32.mrb[0].mxu0
    %v919 = vpop.f32.mrb[0].mxu0
    %v920 = vadd.f32 0.0, %v919
    %v921 = vpop.f32.mrb[0].mxu0
    %922 = vmatprep.mubr.bf16.mxu0 0
    %923 = vmatmul.mubr.bf16.gmra.mrb[0].mxu0 %v849
    %v924 = vpop.f32.mrb[0].mxu0
    %v925 = vadd.f32 0.0, %v924
    %v926 = vpop.f32.mrb[0].mxu0
    %v927 = vpop.f32.mrb[0].mxu0
    %v928 = vadd.f32 0.0, %v927
    %v929 = vpop.f32.mrb[0].mxu0
    %930 = vmatprep.mubr.bf16.mxu0 0
    %931 = vmatmul.mubr.bf16.gmra.mrb[0].mxu0 %v852
    %v932 = vpop.f32.mrb[0].mxu0
    %v933 = vadd.f32 0.0, %v932
    %v934 = vpop.f32.mrb[0].mxu0
    %v935 = vpop.f32.mrb[0].mxu0
    %v936 = vadd.f32 0.0, %v935
    %v937 = vpop.f32.mrb[0].mxu0
    %938 = vmatprep.mubr.bf16.mxu0 0
    %939 = vmatmul.mubr.bf16.gmra.mrb[0].mxu0 %v855
    %v940 = vpop.f32.mrb[0].mxu0
    %v941 = vadd.f32 0.0, %v940
    %v942 = vpop.f32.mrb[0].mxu0
    %v943 = vpop.f32.mrb[0].mxu0
    %v944 = vadd.f32 0.0, %v943
    %v945 = vpop.f32.mrb[0].mxu0
    %946 = vmatprep.mubr.bf16.mxu0 0
    %947 = vmatmul.mubr.bf16.gmra.mrb[0].mxu0 %v858
    %v948 = vpop.f32.mrb[0].mxu0
    %v949 = vadd.f32 0.0, %v948
    %v950 = vpop.f32.mrb[0].mxu0
    %v951 = vpop.f32.mrb[0].mxu0
    %v952 = vadd.f32 0.0, %v951
    %v953 = vpop.f32.mrb[0].mxu0
    %954 = vmatprep.mubr.bf16.mxu0 0
    %955 = vmatmul.mubr.bf16.gmra.mrb[0].mxu0 %v861
    %v956 = vpop.f32.mrb[0].mxu0
    %v957 = vadd.f32 0.0, %v956
    %v958 = vpop.f32.mrb[0].mxu0
    %v959 = vpop.f32.mrb[0].mxu0
    %v960 = vadd.f32 0.0, %v959
    %v961 = vpop.f32.mrb[0].mxu0
    %962 = vdwg.mxu0
    %v963 = vadd.f32 %v764, %v901
    %v964 = vadd.f32 %v765, %v904
    %v965 = vadd.f32 %v766, %v909
    %v966 = vadd.f32 %v767, %v912
    %v967 = vadd.f32 %v768, %v917
    %v968 = vadd.f32 %v769, %v920
    %v969 = vadd.f32 %v770, %v925
    %v970 = vadd.f32 %v771, %v928
    %v971 = vadd.f32 %v772, %v933
    %v972 = vadd.f32 %v773, %v936
    %v973 = vadd.f32 %v774, %v941
    %v974 = vadd.f32 %v775, %v944
    %v975 = vadd.f32 %v776, %v949
    %v976 = vadd.f32 %v777, %v952
    %v977 = vadd.f32 %v778, %v957
    %v978 = vadd.f32 %v779, %v960
    %s979 = scalar_lea.vmem %s0, 320
    %v980 = vld [vmem:[%s979] sm:$0xf]
    %v981 = vld [vmem:[%s979 + $0x4] sm:$0xf]
    %v982 = vld [vmem:[%s979 + $0x8] sm:$0xf]
    %v983 = vld [vmem:[%s979 + $0xc] sm:$0xf]
    %v984 = vld [vmem:[%s979 + $0x10] sm:$0xf]
    %v985 = vld [vmem:[%s979 + $0x14] sm:$0xf]
    %v986 = vld [vmem:[%s979 + $0x18] sm:$0xf]
    %v987 = vld [vmem:[%s979 + $0x1c] sm:$0xf]
    %v988 = vld [vmem:[%s979 + $0x20] sm:$0xf]
    %v989 = vld [vmem:[%s979 + $0x24] sm:$0xf]
    %v990 = vld [vmem:[%s979 + $0x28] sm:$0xf]
    %v991 = vld [vmem:[%s979 + $0x2c] sm:$0xf]
    %v992 = vld [vmem:[%s979 + $0x30] sm:$0xf]
    %v993 = vld [vmem:[%s979 + $0x34] sm:$0xf]
    %v994 = vld [vmem:[%s979 + $0x38] sm:$0xf]
    %v995 = vld [vmem:[%s979 + $0x3c] sm:$0xf]
    %s996 = scalar_lea.vmem %s1, 10
    %v997 = vld [vmem:[%s996] sm:$0x3]
    %v1014 = vunpack.c.l.b16 %v980
    %v1015 = vunpack.c.l.b16 %v981
    %v1016 = vunpack.c.l.b16 %v982
    %v1017 = vunpack.c.l.b16 %v983
    %v1018 = vunpack.c.l.b16 %v984
    %v1019 = vunpack.c.l.b16 %v985
    %v1020 = vunpack.c.l.b16 %v986
    %v1021 = vunpack.c.l.b16 %v987
    %v1022 = vunpack.c.l.b16 %v988
    %v1023 = vunpack.c.l.b16 %v989
    %v1024 = vunpack.c.l.b16 %v990
    %v1025 = vunpack.c.l.b16 %v991
    %v1026 = vunpack.c.l.b16 %v992
    %v1027 = vunpack.c.l.b16 %v993
    %v1028 = vunpack.c.l.b16 %v994
    %v1029 = vunpack.c.l.b16 %v995
    %v1030 = vpack.c.b16 %v1015, %v1014
    %v1031 = vpack.c.b16 %v1017, %v1016
    %v1032 = vpack.c.b16 %v1019, %v1018
    %v1033 = vpack.c.b16 %v1021, %v1020
    %v1034 = vpack.c.b16 %v1023, %v1022
    %v1035 = vpack.c.b16 %v1025, %v1024
    %v1036 = vpack.c.b16 %v1027, %v1026
    %v1037 = vpack.c.b16 %v1029, %v1028
    %v1039 = vsel %vm92, %v1030, 0
    %v1042 = vsel %vm92, %v1031, 0
    %v1045 = vsel %vm92, %v1032, 0
    %v1048 = vsel %vm92, %v1033, 0
    %v1051 = vsel %vm92, %v1034, 0
    %v1054 = vsel %vm92, %v1035, 0
    %v1057 = vsel %vm92, %v1036, 0
    %v1060 = vsel %vm92, %v1037, 0
    %v1063 = vsel %vm117, %v997, 0
    %1065 = vmatprep.subr.bf16.mxu0 0
    %1066 = vmatpush1.bf16.msra.mxu0 %v1063
    %1067 = vmatprep.subr.bf16.mxu0 0
    %1068 = vmatpush1.bf16.msra.mxu0 0
    %1069 = vmatprep.subr.bf16.mxu0 0
    %1070 = vmatpush1.bf16.msra.mxu0 0
    %1071 = vmatprep.subr.bf16.mxu0 0
    %1072 = vmatpush1.bf16.msra.mxu0 0
    %1073 = vmatprep.subr.bf16.mxu0 0
    %1074 = vmatpush1.bf16.msra.mxu0 0
    %1075 = vmatprep.subr.bf16.mxu0 0
    %1076 = vmatpush1.bf16.msra.mxu0 0
    %1077 = vmatprep.subr.bf16.mxu0 0
    %1078 = vmatpush1.bf16.msra.mxu0 0
    %1079 = vmatprep.subr.bf16.mxu0 0
    %1080 = vmatpush1.bf16.msra.mxu0 0
    %1081 = vmatprep.subr.bf16.mxu0 0
    %1082 = vmatpush1.bf16.msra.mxu0 0
    %1083 = vmatprep.subr.bf16.mxu0 0
    %1084 = vmatpush1.bf16.msra.mxu0 0
    %1085 = vmatprep.subr.bf16.mxu0 0
    %1086 = vmatpush1.bf16.msra.mxu0 0
    %1087 = vmatprep.subr.bf16.mxu0 0
    %1088 = vmatpush1.bf16.msra.mxu0 0
    %1089 = vmatprep.subr.bf16.mxu0 0
    %1090 = vmatpush1.bf16.msra.mxu0 0
    %1091 = vmatprep.subr.bf16.mxu0 0
    %1092 = vmatpush1.bf16.msra.mxu0 0
    %1093 = vmatprep.subr.bf16.mxu0 0
    %1094 = vmatpush1.bf16.msra.mxu0 0
    %1095 = vmatprep.subr.bf16.mxu0 0
    %1096 = vmatpush1.bf16.msra.mxu0 0
    %1097 = vmatprep.mubr.bf16.mxu0 0
    %1098 = vmatmul.mubr.bf16.gmra.mrb[0].mxu0 %v1039
    %v1099 = vpop.f32.mrb[0].mxu0
    %v1100 = vadd.f32 0.0, %v1099
    %v1101 = vpop.f32.mrb[0].mxu0
    %v1102 = vpop.f32.mrb[0].mxu0
    %v1103 = vadd.f32 0.0, %v1102
    %v1104 = vpop.f32.mrb[0].mxu0
    %1105 = vmatprep.mubr.bf16.mxu0 0
    %1106 = vmatmul.mubr.bf16.gmra.mrb[0].mxu0 %v1042
    %v1107 = vpop.f32.mrb[0].mxu0
    %v1108 = vadd.f32 0.0, %v1107
    %v1109 = vpop.f32.mrb[0].mxu0
    %v1110 = vpop.f32.mrb[0].mxu0
    %v1111 = vadd.f32 0.0, %v1110
    %v1112 = vpop.f32.mrb[0].mxu0
    %1113 = vmatprep.mubr.bf16.mxu0 0
    %1114 = vmatmul.mubr.bf16.gmra.mrb[0].mxu0 %v1045
    %v1115 = vpop.f32.mrb[0].mxu0
    %v1116 = vadd.f32 0.0, %v1115
    %v1117 = vpop.f32.mrb[0].mxu0
    %v1118 = vpop.f32.mrb[0].mxu0
    %v1119 = vadd.f32 0.0, %v1118
    %v1120 = vpop.f32.mrb[0].mxu0
    %1121 = vmatprep.mubr.bf16.mxu0 0
    %1122 = vmatmul.mubr.bf16.gmra.mrb[0].mxu0 %v1048
    %v1123 = vpop.f32.mrb[0].mxu0
    %v1124 = vadd.f32 0.0, %v1123
    %v1125 = vpop.f32.mrb[0].mxu0
    %v1126 = vpop.f32.mrb[0].mxu0
    %v1127 = vadd.f32 0.0, %v1126
    %v1128 = vpop.f32.mrb[0].mxu0
    %1129 = vmatprep.mubr.bf16.mxu0 0
    %1130 = vmatmul.mubr.bf16.gmra.mrb[0].mxu0 %v1051
    %v1131 = vpop.f32.mrb[0].mxu0
    %v1132 = vadd.f32 0.0, %v1131
    %v1133 = vpop.f32.mrb[0].mxu0
    %v1134 = vpop.f32.mrb[0].mxu0
    %v1135 = vadd.f32 0.0, %v1134
    %v1136 = vpop.f32.mrb[0].mxu0
    %1137 = vmatprep.mubr.bf16.mxu0 0
    %1138 = vmatmul.mubr.bf16.gmra.mrb[0].mxu0 %v1054
    %v1139 = vpop.f32.mrb[0].mxu0
    %v1140 = vadd.f32 0.0, %v1139
    %v1141 = vpop.f32.mrb[0].mxu0
    %v1142 = vpop.f32.mrb[0].mxu0
    %v1143 = vadd.f32 0.0, %v1142
    %v1144 = vpop.f32.mrb[0].mxu0
    %1145 = vmatprep.mubr.bf16.mxu0 0
    %1146 = vmatmul.mubr.bf16.gmra.mrb[0].mxu0 %v1057
    %v1147 = vpop.f32.mrb[0].mxu0
    %v1148 = vadd.f32 0.0, %v1147
    %v1149 = vpop.f32.mrb[0].mxu0
    %v1150 = vpop.f32.mrb[0].mxu0
    %v1151 = vadd.f32 0.0, %v1150
    %v1152 = vpop.f32.mrb[0].mxu0
    %1153 = vmatprep.mubr.bf16.mxu0 0
    %1154 = vmatmul.mubr.bf16.gmra.mrb[0].mxu0 %v1060
    %v1155 = vpop.f32.mrb[0].mxu0
    %v1156 = vadd.f32 0.0, %v1155
    %v1157 = vpop.f32.mrb[0].mxu0
    %v1158 = vpop.f32.mrb[0].mxu0
    %v1159 = vadd.f32 0.0, %v1158
    %v1160 = vpop.f32.mrb[0].mxu0
    %1161 = vdwg.mxu0
    %v1162 = vadd.f32 %v963, %v1100
    %v1163 = vadd.f32 %v964, %v1103
    %v1164 = vadd.f32 %v965, %v1108
    %v1165 = vadd.f32 %v966, %v1111
    %v1166 = vadd.f32 %v967, %v1116
    %v1167 = vadd.f32 %v968, %v1119
    %v1168 = vadd.f32 %v969, %v1124
    %v1169 = vadd.f32 %v970, %v1127
    %v1170 = vadd.f32 %v971, %v1132
    %v1171 = vadd.f32 %v972, %v1135
    %v1172 = vadd.f32 %v973, %v1140
    %v1173 = vadd.f32 %v974, %v1143
    %v1174 = vadd.f32 %v975, %v1148
    %v1175 = vadd.f32 %v976, %v1151
    %v1176 = vadd.f32 %v977, %v1156
    %v1177 = vadd.f32 %v978, %v1159
    %s1178 = scalar_lea.vmem %s0, 384
    %v1179 = vld [vmem:[%s1178] sm:$0xf]
    %v1180 = vld [vmem:[%s1178 + $0x4] sm:$0xf]
    %v1181 = vld [vmem:[%s1178 + $0x8] sm:$0xf]
    %v1182 = vld [vmem:[%s1178 + $0xc] sm:$0xf]
    %v1183 = vld [vmem:[%s1178 + $0x10] sm:$0xf]
    %v1184 = vld [vmem:[%s1178 + $0x14] sm:$0xf]
    %v1185 = vld [vmem:[%s1178 + $0x18] sm:$0xf]
    %v1186 = vld [vmem:[%s1178 + $0x1c] sm:$0xf]
    %v1187 = vld [vmem:[%s1178 + $0x20] sm:$0xf]
    %v1188 = vld [vmem:[%s1178 + $0x24] sm:$0xf]
    %v1189 = vld [vmem:[%s1178 + $0x28] sm:$0xf]
    %v1190 = vld [vmem:[%s1178 + $0x2c] sm:$0xf]
    %v1191 = vld [vmem:[%s1178 + $0x30] sm:$0xf]
    %v1192 = vld [vmem:[%s1178 + $0x34] sm:$0xf]
    %v1193 = vld [vmem:[%s1178 + $0x38] sm:$0xf]
    %v1194 = vld [vmem:[%s1178 + $0x3c] sm:$0xf]
    %s1195 = scalar_lea.vmem %s1, 12
    %v1196 = vld [vmem:[%s1195] sm:$0x3]
    %v1213 = vunpack.c.l.b16 %v1179
    %v1214 = vunpack.c.l.b16 %v1180
    %v1215 = vunpack.c.l.b16 %v1181
    %v1216 = vunpack.c.l.b16 %v1182
    %v1217 = vunpack.c.l.b16 %v1183
    %v1218 = vunpack.c.l.b16 %v1184
    %v1219 = vunpack.c.l.b16 %v1185
    %v1220 = vunpack.c.l.b16 %v1186
    %v1221 = vunpack.c.l.b16 %v1187
    %v1222 = vunpack.c.l.b16 %v1188
    %v1223 = vunpack.c.l.b16 %v1189
    %v1224 = vunpack.c.l.b16 %v1190
    %v1225 = vunpack.c.l.b16 %v1191
    %v1226 = vunpack.c.l.b16 %v1192
    %v1227 = vunpack.c.l.b16 %v1193
    %v1228 = vunpack.c.l.b16 %v1194
    %v1229 = vpack.c.b16 %v1214, %v1213
    %v1230 = vpack.c.b16 %v1216, %v1215
    %v1231 = vpack.c.b16 %v1218, %v1217
    %v1232 = vpack.c.b16 %v1220, %v1219
    %v1233 = vpack.c.b16 %v1222, %v1221
    %v1234 = vpack.c.b16 %v1224, %v1223
    %v1235 = vpack.c.b16 %v1226, %v1225
    %v1236 = vpack.c.b16 %v1228, %v1227
    %v1238 = vsel %vm92, %v1229, 0
    %v1241 = vsel %vm92, %v1230, 0
    %v1244 = vsel %vm92, %v1231, 0
    %v1247 = vsel %vm92, %v1232, 0
    %v1250 = vsel %vm92, %v1233, 0
    %v1253 = vsel %vm92, %v1234, 0
    %v1256 = vsel %vm92, %v1235, 0
    %v1259 = vsel %vm92, %v1236, 0
    %v1262 = vsel %vm117, %v1196, 0
    %1264 = vmatprep.subr.bf16.mxu0 0
    %1265 = vmatpush1.bf16.msra.mxu0 %v1262
    %1266 = vmatprep.subr.bf16.mxu0 0
    %1267 = vmatpush1.bf16.msra.mxu0 0
    %1268 = vmatprep.subr.bf16.mxu0 0
    %1269 = vmatpush1.bf16.msra.mxu0 0
    %1270 = vmatprep.subr.bf16.mxu0 0
    %1271 = vmatpush1.bf16.msra.mxu0 0
    %1272 = vmatprep.subr.bf16.mxu0 0
    %1273 = vmatpush1.bf16.msra.mxu0 0
    %1274 = vmatprep.subr.bf16.mxu0 0
    %1275 = vmatpush1.bf16.msra.mxu0 0
    %1276 = vmatprep.subr.bf16.mxu0 0
    %1277 = vmatpush1.bf16.msra.mxu0 0
    %1278 = vmatprep.subr.bf16.mxu0 0
    %1279 = vmatpush1.bf16.msra.mxu0 0
    %1280 = vmatprep.subr.bf16.mxu0 0
    %1281 = vmatpush1.bf16.msra.mxu0 0
    %1282 = vmatprep.subr.bf16.mxu0 0
    %1283 = vmatpush1.bf16.msra.mxu0 0
    %1284 = vmatprep.subr.bf16.mxu0 0
    %1285 = vmatpush1.bf16.msra.mxu0 0
    %1286 = vmatprep.subr.bf16.mxu0 0
    %1287 = vmatpush1.bf16.msra.mxu0 0
    %1288 = vmatprep.subr.bf16.mxu0 0
    %1289 = vmatpush1.bf16.msra.mxu0 0
    %1290 = vmatprep.subr.bf16.mxu0 0
    %1291 = vmatpush1.bf16.msra.mxu0 0
    %1292 = vmatprep.subr.bf16.mxu0 0
    %1293 = vmatpush1.bf16.msra.mxu0 0
    %1294 = vmatprep.subr.bf16.mxu0 0
    %1295 = vmatpush1.bf16.msra.mxu0 0
    %1296 = vmatprep.mubr.bf16.mxu0 0
    %1297 = vmatmul.mubr.bf16.gmra.mrb[0].mxu0 %v1238
    %v1298 = vpop.f32.mrb[0].mxu0
    %v1299 = vadd.f32 0.0, %v1298
    %v1300 = vpop.f32.mrb[0].mxu0
    %v1301 = vpop.f32.mrb[0].mxu0
    %v1302 = vadd.f32 0.0, %v1301
    %v1303 = vpop.f32.mrb[0].mxu0
    %1304 = vmatprep.mubr.bf16.mxu0 0
    %1305 = vmatmul.mubr.bf16.gmra.mrb[0].mxu0 %v1241
    %v1306 = vpop.f32.mrb[0].mxu0
    %v1307 = vadd.f32 0.0, %v1306
    %v1308 = vpop.f32.mrb[0].mxu0
    %v1309 = vpop.f32.mrb[0].mxu0
    %v1310 = vadd.f32 0.0, %v1309
    %v1311 = vpop.f32.mrb[0].mxu0
    %1312 = vmatprep.mubr.bf16.mxu0 0
    %1313 = vmatmul.mubr.bf16.gmra.mrb[0].mxu0 %v1244
    %v1314 = vpop.f32.mrb[0].mxu0
    %v1315 = vadd.f32 0.0, %v1314
    %v1316 = vpop.f32.mrb[0].mxu0
    %v1317 = vpop.f32.mrb[0].mxu0
    %v1318 = vadd.f32 0.0, %v1317
    %v1319 = vpop.f32.mrb[0].mxu0
    %1320 = vmatprep.mubr.bf16.mxu0 0
    %1321 = vmatmul.mubr.bf16.gmra.mrb[0].mxu0 %v1247
    %v1322 = vpop.f32.mrb[0].mxu0
    %v1323 = vadd.f32 0.0, %v1322
    %v1324 = vpop.f32.mrb[0].mxu0
    %v1325 = vpop.f32.mrb[0].mxu0
    %v1326 = vadd.f32 0.0, %v1325
    %v1327 = vpop.f32.mrb[0].mxu0
    %1328 = vmatprep.mubr.bf16.mxu0 0
    %1329 = vmatmul.mubr.bf16.gmra.mrb[0].mxu0 %v1250
    %v1330 = vpop.f32.mrb[0].mxu0
    %v1331 = vadd.f32 0.0, %v1330
    %v1332 = vpop.f32.mrb[0].mxu0
    %v1333 = vpop.f32.mrb[0].mxu0
    %v1334 = vadd.f32 0.0, %v1333
    %v1335 = vpop.f32.mrb[0].mxu0
    %1336 = vmatprep.mubr.bf16.mxu0 0
    %1337 = vmatmul.mubr.bf16.gmra.mrb[0].mxu0 %v1253
    %v1338 = vpop.f32.mrb[0].mxu0
    %v1339 = vadd.f32 0.0, %v1338
    %v1340 = vpop.f32.mrb[0].mxu0
    %v1341 = vpop.f32.mrb[0].mxu0
    %v1342 = vadd.f32 0.0, %v1341
    %v1343 = vpop.f32.mrb[0].mxu0
    %1344 = vmatprep.mubr.bf16.mxu0 0
    %1345 = vmatmul.mubr.bf16.gmra.mrb[0].mxu0 %v1256
    %v1346 = vpop.f32.mrb[0].mxu0
    %v1347 = vadd.f32 0.0, %v1346
    %v1348 = vpop.f32.mrb[0].mxu0
    %v1349 = vpop.f32.mrb[0].mxu0
    %v1350 = vadd.f32 0.0, %v1349
    %v1351 = vpop.f32.mrb[0].mxu0
    %1352 = vmatprep.mubr.bf16.mxu0 0
    %1353 = vmatmul.mubr.bf16.gmra.mrb[0].mxu0 %v1259
    %v1354 = vpop.f32.mrb[0].mxu0
    %v1355 = vadd.f32 0.0, %v1354
    %v1356 = vpop.f32.mrb[0].mxu0
    %v1357 = vpop.f32.mrb[0].mxu0
    %v1358 = vadd.f32 0.0, %v1357
    %v1359 = vpop.f32.mrb[0].mxu0
    %1360 = vdwg.mxu0
    %v1361 = vadd.f32 %v1162, %v1299
    %v1362 = vadd.f32 %v1163, %v1302
    %v1363 = vadd.f32 %v1164, %v1307
    %v1364 = vadd.f32 %v1165, %v1310
    %v1365 = vadd.f32 %v1166, %v1315
    %v1366 = vadd.f32 %v1167, %v1318
    %v1367 = vadd.f32 %v1168, %v1323
    %v1368 = vadd.f32 %v1169, %v1326
    %v1369 = vadd.f32 %v1170, %v1331
    %v1370 = vadd.f32 %v1171, %v1334
    %v1371 = vadd.f32 %v1172, %v1339
    %v1372 = vadd.f32 %v1173, %v1342
    %v1373 = vadd.f32 %v1174, %v1347
    %v1374 = vadd.f32 %v1175, %v1350
    %v1375 = vadd.f32 %v1176, %v1355
    %v1376 = vadd.f32 %v1177, %v1358
    %s1377 = scalar_lea.vmem %s0, 448
    %v1378 = vld [vmem:[%s1377] sm:$0xf]
    %v1379 = vld [vmem:[%s1377 + $0x4] sm:$0xf]
    %v1380 = vld [vmem:[%s1377 + $0x8] sm:$0xf]
    %v1381 = vld [vmem:[%s1377 + $0xc] sm:$0xf]
    %v1382 = vld [vmem:[%s1377 + $0x10] sm:$0xf]
    %v1383 = vld [vmem:[%s1377 + $0x14] sm:$0xf]
    %v1384 = vld [vmem:[%s1377 + $0x18] sm:$0xf]
    %v1385 = vld [vmem:[%s1377 + $0x1c] sm:$0xf]
    %v1386 = vld [vmem:[%s1377 + $0x20] sm:$0xf]
    %v1387 = vld [vmem:[%s1377 + $0x24] sm:$0xf]
    %v1388 = vld [vmem:[%s1377 + $0x28] sm:$0xf]
    %v1389 = vld [vmem:[%s1377 + $0x2c] sm:$0xf]
    %v1390 = vld [vmem:[%s1377 + $0x30] sm:$0xf]
    %v1391 = vld [vmem:[%s1377 + $0x34] sm:$0xf]
    %v1392 = vld [vmem:[%s1377 + $0x38] sm:$0xf]
    %v1393 = vld [vmem:[%s1377 + $0x3c] sm:$0xf]
    %s1394 = scalar_lea.vmem %s1, 14
    %v1395 = vld [vmem:[%s1394] sm:$0x3]
    %v1412 = vunpack.c.l.b16 %v1378
    %v1413 = vunpack.c.l.b16 %v1379
    %v1414 = vunpack.c.l.b16 %v1380
    %v1415 = vunpack.c.l.b16 %v1381
    %v1416 = vunpack.c.l.b16 %v1382
    %v1417 = vunpack.c.l.b16 %v1383
    %v1418 = vunpack.c.l.b16 %v1384
    %v1419 = vunpack.c.l.b16 %v1385
    %v1420 = vunpack.c.l.b16 %v1386
    %v1421 = vunpack.c.l.b16 %v1387
    %v1422 = vunpack.c.l.b16 %v1388
    %v1423 = vunpack.c.l.b16 %v1389
    %v1424 = vunpack.c.l.b16 %v1390
    %v1425 = vunpack.c.l.b16 %v1391
    %v1426 = vunpack.c.l.b16 %v1392
    %v1427 = vunpack.c.l.b16 %v1393
    %v1428 = vpack.c.b16 %v1413, %v1412
    %v1429 = vpack.c.b16 %v1415, %v1414
    %v1430 = vpack.c.b16 %v1417, %v1416
    %v1431 = vpack.c.b16 %v1419, %v1418
    %v1432 = vpack.c.b16 %v1421, %v1420
    %v1433 = vpack.c.b16 %v1423, %v1422
    %v1434 = vpack.c.b16 %v1425, %v1424
    %v1435 = vpack.c.b16 %v1427, %v1426
    %v1437 = vsel %vm92, %v1428, 0
    %v1440 = vsel %vm92, %v1429, 0
    %v1443 = vsel %vm92, %v1430, 0
    %v1446 = vsel %vm92, %v1431, 0
    %v1449 = vsel %vm92, %v1432, 0
    %v1452 = vsel %vm92, %v1433, 0
    %v1455 = vsel %vm92, %v1434, 0
    %v1458 = vsel %vm92, %v1435, 0
    %v1461 = vsel %vm117, %v1395, 0
    %1463 = vmatprep.subr.bf16.mxu0 0
    %1464 = vmatpush1.bf16.msra.mxu0 %v1461
    %1465 = vmatprep.subr.bf16.mxu0 0
    %1466 = vmatpush1.bf16.msra.mxu0 0
    %1467 = vmatprep.subr.bf16.mxu0 0
    %1468 = vmatpush1.bf16.msra.mxu0 0
    %1469 = vmatprep.subr.bf16.mxu0 0
    %1470 = vmatpush1.bf16.msra.mxu0 0
    %1471 = vmatprep.subr.bf16.mxu0 0
    %1472 = vmatpush1.bf16.msra.mxu0 0
    %1473 = vmatprep.subr.bf16.mxu0 0
    %1474 = vmatpush1.bf16.msra.mxu0 0
    %1475 = vmatprep.subr.bf16.mxu0 0
    %1476 = vmatpush1.bf16.msra.mxu0 0
    %1477 = vmatprep.subr.bf16.mxu0 0
    %1478 = vmatpush1.bf16.msra.mxu0 0
    %1479 = vmatprep.subr.bf16.mxu0 0
    %1480 = vmatpush1.bf16.msra.mxu0 0
    %1481 = vmatprep.subr.bf16.mxu0 0
    %1482 = vmatpush1.bf16.msra.mxu0 0
    %1483 = vmatprep.subr.bf16.mxu0 0
    %1484 = vmatpush1.bf16.msra.mxu0 0
    %1485 = vmatprep.subr.bf16.mxu0 0
    %1486 = vmatpush1.bf16.msra.mxu0 0
    %1487 = vmatprep.subr.bf16.mxu0 0
    %1488 = vmatpush1.bf16.msra.mxu0 0
    %1489 = vmatprep.subr.bf16.mxu0 0
    %1490 = vmatpush1.bf16.msra.mxu0 0
    %1491 = vmatprep.subr.bf16.mxu0 0
    %1492 = vmatpush1.bf16.msra.mxu0 0
    %1493 = vmatprep.subr.bf16.mxu0 0
    %1494 = vmatpush1.bf16.msra.mxu0 0
    %1495 = vmatprep.mubr.bf16.mxu0 0
    %1496 = vmatmul.mubr.bf16.gmra.mrb[0].mxu0 %v1437
    %v1497 = vpop.f32.mrb[0].mxu0
    %v1498 = vadd.f32 0.0, %v1497
    %v1499 = vpop.f32.mrb[0].mxu0
    %v1500 = vpop.f32.mrb[0].mxu0
    %v1501 = vadd.f32 0.0, %v1500
    %v1502 = vpop.f32.mrb[0].mxu0
    %1503 = vmatprep.mubr.bf16.mxu0 0
    %1504 = vmatmul.mubr.bf16.gmra.mrb[0].mxu0 %v1440
    %v1505 = vpop.f32.mrb[0].mxu0
    %v1506 = vadd.f32 0.0, %v1505
    %v1507 = vpop.f32.mrb[0].mxu0
    %v1508 = vpop.f32.mrb[0].mxu0
    %v1509 = vadd.f32 0.0, %v1508
    %v1510 = vpop.f32.mrb[0].mxu0
    %1511 = vmatprep.mubr.bf16.mxu0 0
    %1512 = vmatmul.mubr.bf16.gmra.mrb[0].mxu0 %v1443
    %v1513 = vpop.f32.mrb[0].mxu0
    %v1514 = vadd.f32 0.0, %v1513
    %v1515 = vpop.f32.mrb[0].mxu0
    %v1516 = vpop.f32.mrb[0].mxu0
    %v1517 = vadd.f32 0.0, %v1516
    %v1518 = vpop.f32.mrb[0].mxu0
    %1519 = vmatprep.mubr.bf16.mxu0 0
    %1520 = vmatmul.mubr.bf16.gmra.mrb[0].mxu0 %v1446
    %v1521 = vpop.f32.mrb[0].mxu0
    %v1522 = vadd.f32 0.0, %v1521
    %v1523 = vpop.f32.mrb[0].mxu0
    %v1524 = vpop.f32.mrb[0].mxu0
    %v1525 = vadd.f32 0.0, %v1524
    %v1526 = vpop.f32.mrb[0].mxu0
    %1527 = vmatprep.mubr.bf16.mxu0 0
    %1528 = vmatmul.mubr.bf16.gmra.mrb[0].mxu0 %v1449
    %v1529 = vpop.f32.mrb[0].mxu0
    %v1530 = vadd.f32 0.0, %v1529
    %v1531 = vpop.f32.mrb[0].mxu0
    %v1532 = vpop.f32.mrb[0].mxu0
    %v1533 = vadd.f32 0.0, %v1532
    %v1534 = vpop.f32.mrb[0].mxu0
    %1535 = vmatprep.mubr.bf16.mxu0 0
    %1536 = vmatmul.mubr.bf16.gmra.mrb[0].mxu0 %v1452
    %v1537 = vpop.f32.mrb[0].mxu0
    %v1538 = vadd.f32 0.0, %v1537
    %v1539 = vpop.f32.mrb[0].mxu0
    %v1540 = vpop.f32.mrb[0].mxu0
    %v1541 = vadd.f32 0.0, %v1540
    %v1542 = vpop.f32.mrb[0].mxu0
    %1543 = vmatprep.mubr.bf16.mxu0 0
    %1544 = vmatmul.mubr.bf16.gmra.mrb[0].mxu0 %v1455
    %v1545 = vpop.f32.mrb[0].mxu0
    %v1546 = vadd.f32 0.0, %v1545
    %v1547 = vpop.f32.mrb[0].mxu0
    %v1548 = vpop.f32.mrb[0].mxu0
    %v1549 = vadd.f32 0.0, %v1548
    %v1550 = vpop.f32.mrb[0].mxu0
    %1551 = vmatprep.mubr.bf16.mxu0 0
    %1552 = vmatmul.mubr.bf16.gmra.mrb[0].mxu0 %v1458
    %v1553 = vpop.f32.mrb[0].mxu0
    %v1554 = vadd.f32 0.0, %v1553
    %v1555 = vpop.f32.mrb[0].mxu0
    %v1556 = vpop.f32.mrb[0].mxu0
    %v1557 = vadd.f32 0.0, %v1556
    %v1558 = vpop.f32.mrb[0].mxu0
    %1559 = vdwg.mxu0
    %v1560 = vadd.f32 %v1361, %v1498
    %v1561 = vadd.f32 %v1362, %v1501
    %v1562 = vadd.f32 %v1363, %v1506
    %v1563 = vadd.f32 %v1364, %v1509
    %v1564 = vadd.f32 %v1365, %v1514
    %v1565 = vadd.f32 %v1366, %v1517
    %v1566 = vadd.f32 %v1367, %v1522
    %v1567 = vadd.f32 %v1368, %v1525
    %v1568 = vadd.f32 %v1369, %v1530
    %v1569 = vadd.f32 %v1370, %v1533
    %v1570 = vadd.f32 %v1371, %v1538
    %v1571 = vadd.f32 %v1372, %v1541
    %v1572 = vadd.f32 %v1373, %v1546
    %v1573 = vadd.f32 %v1374, %v1549
    %v1574 = vadd.f32 %v1375, %v1554
    %v1575 = vadd.f32 %v1376, %v1557
    %s1576 = scalar_lea.vmem %s0, 512
    %v1577 = vld [vmem:[%s1576] sm:$0xf]
    %v1578 = vld [vmem:[%s1576 + $0x4] sm:$0xf]
    %v1579 = vld [vmem:[%s1576 + $0x8] sm:$0xf]
    %v1580 = vld [vmem:[%s1576 + $0xc] sm:$0xf]
    %v1581 = vld [vmem:[%s1576 + $0x10] sm:$0xf]
    %v1582 = vld [vmem:[%s1576 + $0x14] sm:$0xf]
    %v1583 = vld [vmem:[%s1576 + $0x18] sm:$0xf]
    %v1584 = vld [vmem:[%s1576 + $0x1c] sm:$0xf]
    %v1585 = vld [vmem:[%s1576 + $0x20] sm:$0xf]
    %v1586 = vld [vmem:[%s1576 + $0x24] sm:$0xf]
    %v1587 = vld [vmem:[%s1576 + $0x28] sm:$0xf]
    %v1588 = vld [vmem:[%s1576 + $0x2c] sm:$0xf]
    %v1589 = vld [vmem:[%s1576 + $0x30] sm:$0xf]
    %v1590 = vld [vmem:[%s1576 + $0x34] sm:$0xf]
    %v1591 = vld [vmem:[%s1576 + $0x38] sm:$0xf]
    %v1592 = vld [vmem:[%s1576 + $0x3c] sm:$0xf]
    %s1593 = scalar_lea.vmem %s1, 16
    %v1594 = vld [vmem:[%s1593] sm:$0x3]
    %v1611 = vunpack.c.l.b16 %v1577
    %v1612 = vunpack.c.l.b16 %v1578
    %v1613 = vunpack.c.l.b16 %v1579
    %v1614 = vunpack.c.l.b16 %v1580
    %v1615 = vunpack.c.l.b16 %v1581
    %v1616 = vunpack.c.l.b16 %v1582
    %v1617 = vunpack.c.l.b16 %v1583
    %v1618 = vunpack.c.l.b16 %v1584
    %v1619 = vunpack.c.l.b16 %v1585
    %v1620 = vunpack.c.l.b16 %v1586
    %v1621 = vunpack.c.l.b16 %v1587
    %v1622 = vunpack.c.l.b16 %v1588
    %v1623 = vunpack.c.l.b16 %v1589
    %v1624 = vunpack.c.l.b16 %v1590
    %v1625 = vunpack.c.l.b16 %v1591
    %v1626 = vunpack.c.l.b16 %v1592
    %v1627 = vpack.c.b16 %v1612, %v1611
    %v1628 = vpack.c.b16 %v1614, %v1613
    %v1629 = vpack.c.b16 %v1616, %v1615
    %v1630 = vpack.c.b16 %v1618, %v1617
    %v1631 = vpack.c.b16 %v1620, %v1619
    %v1632 = vpack.c.b16 %v1622, %v1621
    %v1633 = vpack.c.b16 %v1624, %v1623
    %v1634 = vpack.c.b16 %v1626, %v1625
    %v1636 = vsel %vm92, %v1627, 0
    %v1639 = vsel %vm92, %v1628, 0
    %v1642 = vsel %vm92, %v1629, 0
    %v1645 = vsel %vm92, %v1630, 0
    %v1648 = vsel %vm92, %v1631, 0
    %v1651 = vsel %vm92, %v1632, 0
    %v1654 = vsel %vm92, %v1633, 0
    %v1657 = vsel %vm92, %v1634, 0
    %v1660 = vsel %vm117, %v1594, 0
    %1662 = vmatprep.subr.bf16.mxu0 0
    %1663 = vmatpush1.bf16.msra.mxu0 %v1660
    %1664 = vmatprep.subr.bf16.mxu0 0
    %1665 = vmatpush1.bf16.msra.mxu0 0
    %1666 = vmatprep.subr.bf16.mxu0 0
    %1667 = vmatpush1.bf16.msra.mxu0 0
    %1668 = vmatprep.subr.bf16.mxu0 0
    %1669 = vmatpush1.bf16.msra.mxu0 0
    %1670 = vmatprep.subr.bf16.mxu0 0
    %1671 = vmatpush1.bf16.msra.mxu0 0
    %1672 = vmatprep.subr.bf16.mxu0 0
    %1673 = vmatpush1.bf16.msra.mxu0 0
    %1674 = vmatprep.subr.bf16.mxu0 0
    %1675 = vmatpush1.bf16.msra.mxu0 0
    %1676 = vmatprep.subr.bf16.mxu0 0
    %1677 = vmatpush1.bf16.msra.mxu0 0
    %1678 = vmatprep.subr.bf16.mxu0 0
    %1679 = vmatpush1.bf16.msra.mxu0 0
    %1680 = vmatprep.subr.bf16.mxu0 0
    %1681 = vmatpush1.bf16.msra.mxu0 0
    %1682 = vmatprep.subr.bf16.mxu0 0
    %1683 = vmatpush1.bf16.msra.mxu0 0
    %1684 = vmatprep.subr.bf16.mxu0 0
    %1685 = vmatpush1.bf16.msra.mxu0 0
    %1686 = vmatprep.subr.bf16.mxu0 0
    %1687 = vmatpush1.bf16.msra.mxu0 0
    %1688 = vmatprep.subr.bf16.mxu0 0
    %1689 = vmatpush1.bf16.msra.mxu0 0
    %1690 = vmatprep.subr.bf16.mxu0 0
    %1691 = vmatpush1.bf16.msra.mxu0 0
    %1692 = vmatprep.subr.bf16.mxu0 0
    %1693 = vmatpush1.bf16.msra.mxu0 0
    %1694 = vmatprep.mubr.bf16.mxu0 0
    %1695 = vmatmul.mubr.bf16.gmra.mrb[0].mxu0 %v1636
    %v1696 = vpop.f32.mrb[0].mxu0
    %v1697 = vadd.f32 0.0, %v1696
    %v1698 = vpop.f32.mrb[0].mxu0
    %v1699 = vpop.f32.mrb[0].mxu0
    %v1700 = vadd.f32 0.0, %v1699
    %v1701 = vpop.f32.mrb[0].mxu0
    %1702 = vmatprep.mubr.bf16.mxu0 0
    %1703 = vmatmul.mubr.bf16.gmra.mrb[0].mxu0 %v1639
    %v1704 = vpop.f32.mrb[0].mxu0
    %v1705 = vadd.f32 0.0, %v1704
    %v1706 = vpop.f32.mrb[0].mxu0
    %v1707 = vpop.f32.mrb[0].mxu0
    %v1708 = vadd.f32 0.0, %v1707
    %v1709 = vpop.f32.mrb[0].mxu0
    %1710 = vmatprep.mubr.bf16.mxu0 0
    %1711 = vmatmul.mubr.bf16.gmra.mrb[0].mxu0 %v1642
    %v1712 = vpop.f32.mrb[0].mxu0
    %v1713 = vadd.f32 0.0, %v1712
    %v1714 = vpop.f32.mrb[0].mxu0
    %v1715 = vpop.f32.mrb[0].mxu0
    %v1716 = vadd.f32 0.0, %v1715
    %v1717 = vpop.f32.mrb[0].mxu0
    %1718 = vmatprep.mubr.bf16.mxu0 0
    %1719 = vmatmul.mubr.bf16.gmra.mrb[0].mxu0 %v1645
    %v1720 = vpop.f32.mrb[0].mxu0
    %v1721 = vadd.f32 0.0, %v1720
    %v1722 = vpop.f32.mrb[0].mxu0
    %v1723 = vpop.f32.mrb[0].mxu0
    %v1724 = vadd.f32 0.0, %v1723
    %v1725 = vpop.f32.mrb[0].mxu0
    %1726 = vmatprep.mubr.bf16.mxu0 0
    %1727 = vmatmul.mubr.bf16.gmra.mrb[0].mxu0 %v1648
    %v1728 = vpop.f32.mrb[0].mxu0
    %v1729 = vadd.f32 0.0, %v1728
    %v1730 = vpop.f32.mrb[0].mxu0
    %v1731 = vpop.f32.mrb[0].mxu0
    %v1732 = vadd.f32 0.0, %v1731
    %v1733 = vpop.f32.mrb[0].mxu0
    %1734 = vmatprep.mubr.bf16.mxu0 0
    %1735 = vmatmul.mubr.bf16.gmra.mrb[0].mxu0 %v1651
    %v1736 = vpop.f32.mrb[0].mxu0
    %v1737 = vadd.f32 0.0, %v1736
    %v1738 = vpop.f32.mrb[0].mxu0
    %v1739 = vpop.f32.mrb[0].mxu0
    %v1740 = vadd.f32 0.0, %v1739
    %v1741 = vpop.f32.mrb[0].mxu0
    %1742 = vmatprep.mubr.bf16.mxu0 0
    %1743 = vmatmul.mubr.bf16.gmra.mrb[0].mxu0 %v1654
    %v1744 = vpop.f32.mrb[0].mxu0
    %v1745 = vadd.f32 0.0, %v1744
    %v1746 = vpop.f32.mrb[0].mxu0
    %v1747 = vpop.f32.mrb[0].mxu0
    %v1748 = vadd.f32 0.0, %v1747
    %v1749 = vpop.f32.mrb[0].mxu0
    %1750 = vmatprep.mubr.bf16.mxu0 0
    %1751 = vmatmul.mubr.bf16.gmra.mrb[0].mxu0 %v1657
    %v1752 = vpop.f32.mrb[0].mxu0
    %v1753 = vadd.f32 0.0, %v1752
    %v1754 = vpop.f32.mrb[0].mxu0
    %v1755 = vpop.f32.mrb[0].mxu0
    %v1756 = vadd.f32 0.0, %v1755
    %v1757 = vpop.f32.mrb[0].mxu0
    %1758 = vdwg.mxu0
    %v1759 = vadd.f32 %v1560, %v1697
    %v1760 = vadd.f32 %v1561, %v1700
    %v1761 = vadd.f32 %v1562, %v1705
    %v1762 = vadd.f32 %v1563, %v1708
    %v1763 = vadd.f32 %v1564, %v1713
    %v1764 = vadd.f32 %v1565, %v1716
    %v1765 = vadd.f32 %v1566, %v1721
    %v1766 = vadd.f32 %v1567, %v1724
    %v1767 = vadd.f32 %v1568, %v1729
    %v1768 = vadd.f32 %v1569, %v1732
    %v1769 = vadd.f32 %v1570, %v1737
    %v1770 = vadd.f32 %v1571, %v1740
    %v1771 = vadd.f32 %v1572, %v1745
    %v1772 = vadd.f32 %v1573, %v1748
    %v1773 = vadd.f32 %v1574, %v1753
    %v1774 = vadd.f32 %v1575, %v1756
    %v1775 = vld [vmem:[%s2] sm:$0x1]
    %v1777 = vlaneseq
    %v1778 = vshrl.u32 %v1777, 7
    %v1779 = vsub.s32 0, %v1778
    %v1780 = vrot.slane %v1775, %v1779
    %v1782 = vadd.f32 %v1759, %v1780
    %v1783 = vadd.f32 %v1760, %v1780
    %v1784 = vadd.f32 %v1761, %v1780
    %v1785 = vadd.f32 %v1762, %v1780
    %v1786 = vadd.f32 %v1763, %v1780
    %v1787 = vadd.f32 %v1764, %v1780
    %v1788 = vadd.f32 %v1765, %v1780
    %v1789 = vadd.f32 %v1766, %v1780
    %v1790 = vadd.f32 %v1767, %v1780
    %v1791 = vadd.f32 %v1768, %v1780
    %v1792 = vadd.f32 %v1769, %v1780
    %v1793 = vadd.f32 %v1770, %v1780
    %v1794 = vadd.f32 %v1771, %v1780
    %v1795 = vadd.f32 %v1772, %v1780
    %v1796 = vadd.f32 %v1773, %v1780
    %v1797 = vadd.f32 %v1774, %v1780
    %1798 = vst [vmem:[#allocation2] sm:$0xff] %v1782
    %1799 = vst [vmem:[#allocation2 + $0x8] sm:$0xff] %v1783
    %1800 = vst [vmem:[#allocation2 + $0x10] sm:$0xff] %v1784
    %1801 = vst [vmem:[#allocation2 + $0x18] sm:$0xff] %v1785
    %1802 = vst [vmem:[#allocation2 + $0x20] sm:$0xff] %v1786
    %1803 = vst [vmem:[#allocation2 + $0x28] sm:$0xff] %v1787
    %1804 = vst [vmem:[#allocation2 + $0x30] sm:$0xff] %v1788
    %1805 = vst [vmem:[#allocation2 + $0x38] sm:$0xff] %v1789
    %1806 = vst [vmem:[#allocation2 + $0x40] sm:$0xff] %v1790
    %1807 = vst [vmem:[#allocation2 + $0x48] sm:$0xff] %v1791
    %1808 = vst [vmem:[#allocation2 + $0x50] sm:$0xff] %v1792
    %1809 = vst [vmem:[#allocation2 + $0x58] sm:$0xff] %v1793
    %1810 = vst [vmem:[#allocation2 + $0x60] sm:$0xff] %v1794
    %1811 = vst [vmem:[#allocation2 + $0x68] sm:$0xff] %v1795
    %1812 = vst [vmem:[#allocation2 + $0x70] sm:$0xff] %v1796
    %1813 = vst [vmem:[#allocation2 + $0x78] sm:$0xff] %v1797
    // Predicated region
    $region14: #{tpu_custom_call.1} parent=1 // pred_check
      _
    $region15: #{tpu_custom_call.1} parent=1 // pred_check_branch
      %1815 = sbr.rel (0) target = $region17
    $region16: #{tpu_custom_call.1} parent=1 // pred_region
      %s1817 = ssub.s32 2048, 2048
      %1818 = vsyncadd [#allocation3], %s1817
      %s1819 = sshll.u32 [#allocation2], 4
      %s1820 = int_to_ptr.vmem [resolvable:$true] %s1819
      %1825 = dma.vmem_to_hbm [thread:$0]  %s1820, 2048, %s3, [#allocation3], 128, 128, 8
    $region17: #{tpu_custom_call.1} parent=1 // pred_fallthru
      _
    // Predicated region
    $region18: #{tpu_custom_call.1} parent=1 // pred_check
      _
    $region19: #{tpu_custom_call.1} parent=1 // pred_check_branch
      %1827 = sbr.rel (0) target = $region21
    $region20: #{tpu_custom_call.1} parent=1 // pred_region
      %1828 = dma.done [#allocation3], 2048
    $region21: #{tpu_custom_call.1} parent=1 // pred_fallthru
      _
    %1829 = vsyncpa [#allocation3], 1

</llo_original>
